<compile_context>
chip_gen: v5e
topology: v5e:2x2
jax: 0.10.0
libtpu: 0.0.40
codegen_flags: <defaults>
</compile_context>

<pallas_src>
import functools

import jax
import jax.numpy as jnp
from jax.experimental import pallas as pl
from jax.experimental.pallas import tpu as pltpu


def _round_up(x, m):
    return (x + m - 1) // m * m


# --------------------------------------------------------------------------------------
# Fused Pallas kernel
# --------------------------------------------------------------------------------------
def gearnet_fused_kernel(x_hbm_ref, src_rel_ref, dst_t_ref, ew_t_ref, n2g_ref,
                         w_ref, b_ref, nf_ref, gf_ref,
                         upd_ref, hbf_ref, dma_sem, *, num_relation):
    """Fused GearNet forward. grid = (num_layers, num_edge_blocks).

    x_hbm_ref : (Np, Dp)   HBM   padded input node features (copied once into nf_ref)
    src_rel_ref:(E_blk, 2) VMEM  [src, rel] per edge tile (pad rows = -1)
    dst_t_ref : (1, E_blk) VMEM  dst node per edge, lane-dense (pad = -1)
    ew_t_ref  : (1, E_blk) VMEM  edge weights, lane-dense (pad = 0)
    n2g_ref   : (1, Np)    VMEM  node -> graph id (pad = -1)
    w_ref     : (1, R, Dp, Dp)   current layer weight per relation (bf16, zero padded)
    b_ref     : (1, 1, Dp)       current layer bias (f32, zero padded)
    nf_ref    : (Np, Dp)   OUT   node features; resident accumulator / activation buffer
    gf_ref    : (Gp, Dp)   OUT   graph features (sum readout)
    upd_ref   : (Np, Dp)   VMEM  per-node scatter-add accumulator (f32)
    hbf_ref   : (Np, Dp)   VMEM  bf16 copy of activations (gather matmul operand)
    dma_sem   : DMA semaphore for the one-shot x -> nf copy
    """
    layer = pl.program_id(0)
    eblk = pl.program_id(1)
    n_layers = pl.num_programs(0)
    n_eblocks = pl.num_programs(1)

    e_blk = src_rel_ref.shape[0]
    n_pad = nf_ref.shape[0]
    d_pad = nf_ref.shape[1]

    # First grid step: DMA the padded input features into the resident activation buffer
    # (x is kept in HBM; no double-buffered BlockSpec holding 2x Np*Dp*4 for the whole run).
    @pl.when((layer == 0) & (eblk == 0))
    def _():
        cp = pltpu.make_async_copy(x_hbm_ref, nf_ref, dma_sem)
        cp.start()
        cp.wait()

    # Start of every layer: clear the (Np, Dp) scatter accumulator and refresh the bf16
    # copy of the activations used as the gather-matmul operand (once per layer, not per tile).
    @pl.when(eblk == 0)
    def _():
        upd_ref[...] = jnp.zeros_like(upd_ref)
        hbf_ref[...] = nf_ref[...].astype(jnp.bfloat16)

    src = src_rel_ref[:, 0:1]                                   # (E_blk, 1)
    rel = src_rel_ref[:, 1:2]                                   # (E_blk, 1)
    dst_row = dst_t_ref[...]                                    # (1, E_blk)
    ew_row = ew_t_ref[...]                                      # (1, E_blk)

    # Gather h[src] via an exact 0/1 bf16 one-hot matmul (contraction on the lane dim).
    col = jax.lax.broadcasted_iota(jnp.int32, (e_blk, n_pad), 1)
    gather_oh = jnp.where(col == src, 1.0, 0.0).astype(jnp.bfloat16)     # (E_blk, Np)
    msg = jnp.dot(gather_oh, hbf_ref[...], preferred_element_type=jnp.float32)
    msg = msg.astype(jnp.bfloat16)      # lossless: rows are single bf16 activation rows

    # Weight folded into the edge tile: relation-selected projection (E_blk, Dp).
    proj = jnp.zeros((e_blk, d_pad), jnp.float32)
    for rr in range(num_relation):
        mask_r = jnp.where(rel == rr, 1.0, 0.0).astype(jnp.bfloat16)     # (E_blk, 1)
        proj = proj + jnp.dot(msg * mask_r, w_ref[0, rr],
                              preferred_element_type=jnp.float32)
    proj = proj.astype(jnp.bfloat16)

    # Scatter-add over destination nodes with edge_weight folded into the scatter values.
    # One-hot built pre-transposed (Np, E_blk) -> plain minor-dim matmul, no XLU transpose.
    row = jax.lax.broadcasted_iota(jnp.int32, (n_pad, e_blk), 0)
    scatter_t = jnp.where(row == dst_row, ew_row, 0.0).astype(jnp.bfloat16)  # (Np, E_blk)
    upd_ref[...] += jnp.dot(scatter_t, proj, preferred_element_type=jnp.float32)

    # End of layer: bias + ReLU into the resident activation buffer.
    # (Padded node rows end up holding relu(bias); harmless: the gather never reads them
    #  and the readout masks them via node2graph == -1.)
    @pl.when(eblk == n_eblocks - 1)
    def _():
        nf_ref[...] = jnp.maximum(upd_ref[...] + b_ref[0], 0.0)

    # End of last layer: sum readout over graphs (pre-transposed one-hot).
    @pl.when((layer == n_layers - 1) & (eblk == n_eblocks - 1))
    def _():
        g_pad = gf_ref.shape[0]
        grow = jax.lax.broadcasted_iota(jnp.int32, (g_pad, n_pad), 0)
        g_oh = jnp.where(grow == n2g_ref[...], 1.0, 0.0).astype(jnp.bfloat16)  # (Gp, Np)
        gf_ref[...] = jnp.dot(g_oh, nf_ref[...].astype(jnp.bfloat16),
                              preferred_element_type=jnp.float32)


# --------------------------------------------------------------------------------------
# Wrapper
# --------------------------------------------------------------------------------------
def gearnet_forward(node_feat, edge_list, edge_weight, node2graph, num_graphs,
                    params, num_relation, *, edge_tile=512):
    """GearNet.forward (concat_hidden=False, short_cut=False, batch_norm=False, readout='sum')."""
    node_feat = node_feat.astype(jnp.float32)
    n_nodes, d_in = node_feat.shape
    num_layers = len(params)
    dims = [d_in] + [w.shape[-1] for (w, _) in params]
    d_pad = _round_up(max(dims), 128)          # shared lane-dense feature slab for all layers
    n_pad = _round_up(n_nodes, 8)
    g_pad = _round_up(num_graphs, 8)
    n_edges = edge_list.shape[0]
    edge_tile = _round_up(max(int(edge_tile), 128), 128)
    e_pad = _round_up(max(n_edges, 1), edge_tile)
    r = num_relation

    # Padded node features (extra rows/cols zero); stays in HBM, copied once in-kernel.
    x = jnp.zeros((n_pad, d_pad), jnp.float32).at[:n_nodes, :d_in].set(node_feat)

    # src/rel per edge (pad rows = -1 -> all-zero one-hot / mask rows).
    src_rel = jnp.full((e_pad, 2), -1, jnp.int32)
    src_rel = src_rel.at[:n_edges, 0].set(edge_list[:, 0].astype(jnp.int32))
    src_rel = src_rel.at[:n_edges, 1].set(edge_list[:, 2].astype(jnp.int32))
    # dst / edge_weight / node2graph shipped lane-dense as (1, E) rows.
    dst_t = jnp.full((1, e_pad), -1, jnp.int32).at[0, :n_edges].set(
        edge_list[:, 1].astype(jnp.int32))
    ew_t = jnp.zeros((1, e_pad), jnp.float32).at[0, :n_edges].set(
        edge_weight.astype(jnp.float32))
    n2g = jnp.full((1, n_pad), -1, jnp.int32).at[0, :n_nodes].set(node2graph.astype(jnp.int32))

    # Per-layer, per-relation weights (bf16) and biases (f32), zero padded to (Dp, Dp).
    w_stack = jnp.zeros((num_layers, r, d_pad, d_pad), jnp.float32)
    b_stack = jnp.zeros((num_layers, 1, d_pad), jnp.float32)
    for li, (w, b) in enumerate(params):
        assert w.shape[0] == r
        d_i, d_o = w.shape[1], w.shape[2]
        w_stack = w_stack.at[li, :, :d_i, :d_o].set(w.astype(jnp.float32))
        b_stack = b_stack.at[li, 0, :d_o].set(b[0].astype(jnp.float32))
    w_stack = w_stack.astype(jnp.bfloat16)

    n_eblocks = e_pad // edge_tile
    kernel = functools.partial(gearnet_fused_kernel, num_relation=r)

    # ---- VMEM budget computed from the actual shapes (not hard-coded). ----
    est = 0
    est += 2 * n_pad * d_pad * 4            # node_feature output block (assume 2x buffered)
    est += 2 * g_pad * d_pad * 4            # graph_feature output block
    est += n_pad * d_pad * 4                # upd scratch (f32)
    est += n_pad * d_pad * 2                # bf16 activation scratch
    est += 2 * r * d_pad * d_pad * 2        # layer weights (bf16, double-buffered)
    est += 2 * d_pad * 4                    # layer bias
    est += 2 * edge_tile * 128 * 4          # src/rel block (lane-padded to 128)
    est += 2 * 2 * 8 * edge_tile * 4        # dst_t / ew_t blocks (sublane-padded to 8)
    est += 2 * edge_tile * n_pad * 2        # gather / scatter one-hot temporaries (bf16)
    est += 2 * edge_tile * n_pad * 4        # iota / compare temporaries (int32)
    est += 6 * edge_tile * d_pad * 4        # msg / masked-msg / proj temporaries
    est += 2 * g_pad * n_pad * 4            # readout one-hot / iota
    try:
        vmem_cap = int(pltpu.get_tpu_info().vmem_capacity_bytes)
    except Exception:
        vmem_cap = 64 * 1024 * 1024
    vmem_limit = max(min(int(est * 1.5) + (4 << 20), vmem_cap - (4 << 20)), 16 << 20)

    nf_pad, gf_pad = pl.pallas_call(
        kernel,
        out_shape=(jax.ShapeDtypeStruct((n_pad, d_pad), jnp.float32),
                   jax.ShapeDtypeStruct((g_pad, d_pad), jnp.float32)),
        grid_spec=pltpu.PrefetchScalarGridSpec(
            num_scalar_prefetch=0,
            grid=(num_layers, n_eblocks),
            in_specs=[
                pl.BlockSpec(memory_space=pl.ANY),                          # x (HBM, copied once)
                pl.BlockSpec((edge_tile, 2), lambda l, e: (e, 0)),          # src / rel
                pl.BlockSpec((1, edge_tile), lambda l, e: (0, e)),          # dst (lane-dense)
                pl.BlockSpec((1, edge_tile), lambda l, e: (0, e)),          # edge weight
                pl.BlockSpec((1, n_pad), lambda l, e: (0, 0)),              # node2graph
                pl.BlockSpec((1, r, d_pad, d_pad), lambda l, e: (l, 0, 0, 0)),  # layer weights
                pl.BlockSpec((1, 1, d_pad), lambda l, e: (l, 0, 0)),        # layer bias
            ],
            out_specs=[
                pl.BlockSpec((n_pad, d_pad), lambda l, e: (0, 0)),          # node_feature (resident)
                pl.BlockSpec((g_pad, d_pad), lambda l, e: (0, 0)),          # graph_feature (resident)
            ],
            scratch_shapes=[
                pltpu.VMEM((n_pad, d_pad), jnp.float32),    # scatter accumulator
                pltpu.VMEM((n_pad, d_pad), jnp.bfloat16),   # bf16 activations for gather
                pltpu.SemaphoreType.DMA(()),                # x -> nf one-shot copy
            ],
        ),
        compiler_params=pltpu.CompilerParams(
            dimension_semantics=("arbitrary", "arbitrary"),
            vmem_limit_bytes=vmem_limit,
        ),
    )(x, src_rel, dst_t, ew_t, n2g, w_stack, b_stack)

    d_out = dims[-1]
    return {"graph_feature": gf_pad[:num_graphs, :d_out],
            "node_feature": nf_pad[:n_nodes, :d_out]}


# --------------------------------------------------------------------------------------
# Pure-JAX fp32 reference (for correctness check; kernel uses bf16 MXU operands)
# --------------------------------------------------------------------------------------
def gearnet_reference(node_feat, edge_list, edge_weight, node2graph, num_graphs,
                      params, num_relation):
    N = node_feat.shape[0]
    layer_input = node_feat
    for (w, b) in params:
        d_in = layer_input.shape[1]
        d_out = w.shape[-1]
        msg = layer_input[edge_list[:, 0]] * edge_weight[:, None]
        node_out = edge_list[:, 1] * num_relation + edge_list[:, 2]
        upd = jnp.zeros((N * num_relation, d_in), jnp.float32).at[node_out].add(msg)
        upd = upd.reshape(N, num_relation * d_in)
        hidden = jax.nn.relu(upd @ w.reshape(num_relation * d_in, d_out) + b[0])
        layer_input = hidden
    node_feature = layer_input
    graph_feature = jnp.zeros((num_graphs, node_feature.shape[1]),
                              jnp.float32).at[node2graph].add(node_feature)
    return graph_feature, node_feature


# --------------------------------------------------------------------------------------
# Deterministic parameter init (mimics nn.Linear(num_relation*D_in, D_out) default init)
# --------------------------------------------------------------------------------------
def init_params(key, dims, num_relation):
    params = []
    for i in range(len(dims) - 1):
        d_in, d_out = dims[i], dims[i + 1]
        fan_in = num_relation * d_in
        bound = 1.0 / jnp.sqrt(float(fan_in))
        key, kw, kb = jax.random.split(key, 3)
        # torch linear.weight has shape (d_out, R*d_in); we store W.T reshaped to (R, d_in, d_out)
        w = jax.random.uniform(kw, (num_relation * d_in, d_out), jnp.float32, -bound, bound)
        w = w.reshape(num_relation, d_in, d_out)
        b = jax.random.uniform(kb, (1, d_out), jnp.float32, -bound, bound)
        params.append((w, b))
    return params


# --------------------------------------------------------------------------------------
if __name__ == "__main__":
    key = jax.random.PRNGKey(0)

    # Small synthetic graph batch
    input_dim = 16
    hidden_dims = [32, 32]
    num_relation = 4
    N = 24          # total nodes across the batch
    E = 300         # total edges (> edge_tile so the multi-tile accumulator path runs)
    num_graphs = 2

    k1, k2, k3, k4, k5, kp = jax.random.split(key, 6)
    node_feat = jax.random.normal(k1, (N, input_dim), jnp.float32)
    src = jax.random.randint(k2, (E,), 0, N, jnp.int32)
    dst = jax.random.randint(k3, (E,), 0, N, jnp.int32)
    rel = jax.random.randint(k4, (E,), 0, num_relation, jnp.int32)
    edge_list = jnp.stack([src, dst, rel], axis=1)          # (E, 3) like graph.edge_list
    edge_weight = jax.random.uniform(k5, (E,), jnp.float32, 0.5, 1.5)
    node2graph = jnp.concatenate([jnp.zeros(N // 2, jnp.int32),
                                  jnp.ones(N - N // 2, jnp.int32)])

    dims = [input_dim, *hidden_dims]
    params = init_params(kp, dims, num_relation)

    # edge_tile=128 -> grid (num_layers=2, num_edge_blocks=3), exercising padding + accumulation.
    out = gearnet_forward(node_feat, edge_list, edge_weight, node2graph, num_graphs,
                          params, num_relation, edge_tile=128)
    jax.block_until_ready(out)

    # Correctness check against the fp32 reference (kernel uses bf16 MXU operands with f32
    # accumulation -> tolerance reflects bf16 operand rounding).
    ref_gf, ref_nf = gearnet_reference(node_feat, edge_list, edge_weight, node2graph,
                                       num_graphs, params, num_relation)
    assert jnp.allclose(out["node_feature"], ref_nf, rtol=5e-2, atol=1e-1), "node_feature mismatch"
    assert jnp.allclose(out["graph_feature"], ref_gf, rtol=5e-2, atol=1e-1), "graph_feature mismatch"

    print("KERNEL_OK")
</pallas_src>

<mosaic_0001>
module attributes {stable_mosaic.version = 11 : i64} {
  func.func @gearnet_fused_kernel(%arg0: i32, %arg1: i32, %arg2: memref<24x128xf32, #tpu.memory_space<any>>, %arg3: memref<128x2xi32, #tpu.memory_space<vmem>>, %arg4: memref<1x128xi32, #tpu.memory_space<vmem>>, %arg5: memref<1x128xf32, #tpu.memory_space<vmem>>, %arg6: memref<1x24xi32, #tpu.memory_space<vmem>>, %arg7: memref<1x4x128x128xbf16, #tpu.memory_space<vmem>>, %arg8: memref<1x1x128xf32, #tpu.memory_space<vmem>>, %arg9: memref<24x128xf32, #tpu.memory_space<vmem>>, %arg10: memref<8x128xf32, #tpu.memory_space<vmem>>, %arg11: memref<24x128xf32, #tpu.memory_space<vmem>>, %arg12: memref<24x128xbf16, #tpu.memory_space<vmem>>, %arg13: memref<!tpu.dma_semaphore, #tpu.memory_space<semaphore_mem>>) attributes {dimension_semantics = [#tpu.dimension_semantics<arbitrary>, #tpu.dimension_semantics<arbitrary>], iteration_bounds = array<i64: 2, 3>, scalar_prefetch = 0 : i64, scratch_operands = 3 : i64, tpu.core_type = #tpu.core_type<tc>, window_params = [{}, {transform_indices = @transform_1, window_bounds = array<i64: 128, 2>}, {transform_indices = @transform_2, window_bounds = array<i64: 1, 128>}, {transform_indices = @transform_3, window_bounds = array<i64: 1, 128>}, {pipeline_mode = #tpu.pipeline_mode<synchronous>, transform_indices = @transform_4, window_bounds = array<i64: 1, 24>}, {transform_indices = @transform_5, window_bounds = array<i64: 1, 4, 128, 128>}, {transform_indices = @transform_6, window_bounds = array<i64: 1, 1, 128>}, {pipeline_mode = #tpu.pipeline_mode<synchronous>, transform_indices = @transform_7, window_bounds = array<i64: 24, 128>}, {pipeline_mode = #tpu.pipeline_mode<synchronous>, transform_indices = @transform_8, window_bounds = array<i64: 8, 128>}]} {
    %c0_i32 = arith.constant 0 : i32
    %0 = arith.cmpi eq, %arg0, %c0_i32 : i32
    %c0_i32_0 = arith.constant 0 : i32
    %1 = arith.cmpi eq, %arg1, %c0_i32_0 : i32
    %2 = arith.andi %0, %1 : i1
    %3 = arith.extui %2 : i1 to i32
    %c0_i32_1 = arith.constant 0 : i32
    %4 = arith.cmpi ne, %3, %c0_i32_1 : i32
    scf.if %4 {
      tpu.enqueue_dma source(%arg2 : memref<24x128xf32, #tpu.memory_space<any>>) target(%arg9 : memref<24x128xf32, #tpu.memory_space<vmem>>) target_semaphore(%arg13 : memref<!tpu.dma_semaphore, #tpu.memory_space<semaphore_mem>>)
      tpu.wait_dma2 semaphore(%arg13 : memref<!tpu.dma_semaphore, #tpu.memory_space<semaphore_mem>>) src(%arg2 : memref<24x128xf32, #tpu.memory_space<any>>) dst(%arg9 : memref<24x128xf32, #tpu.memory_space<vmem>>)
    } else {
    }
    %c0_i32_2 = arith.constant 0 : i32
    %5 = arith.cmpi eq, %arg1, %c0_i32_2 : i32
    %6 = arith.extui %5 : i1 to i32
    %c0_i32_3 = arith.constant 0 : i32
    %7 = arith.cmpi ne, %6, %c0_i32_3 : i32
    scf.if %7 {
      %cst_53 = arith.constant 0.000000e+00 : f32
      %92 = vector.broadcast %cst_53 : f32 to vector<24x128xf32>
      %c0_54 = arith.constant 0 : index
      %c0_55 = arith.constant 0 : index
      %93 = vector.load %arg11[%c0_54, %c0_55] : memref<24x128xf32, #tpu.memory_space<vmem>>, vector<24x128xf32>
      tpu.vector_store %arg11[%c0_54, %c0_55], %92 {strides = array<i32>} : memref<24x128xf32, #tpu.memory_space<vmem>>, vector<24x128xf32>,
      %c0_56 = arith.constant 0 : index
      %c0_57 = arith.constant 0 : index
      %94 = vector.load %arg9[%c0_56, %c0_57] : memref<24x128xf32, #tpu.memory_space<vmem>>, vector<24x128xf32>
      %95 = arith.truncf %94 : vector<24x128xf32> to vector<24x128xbf16>
      %c0_58 = arith.constant 0 : index
      %c0_59 = arith.constant 0 : index
      %96 = vector.load %arg12[%c0_58, %c0_59] : memref<24x128xbf16, #tpu.memory_space<vmem>>, vector<24x128xbf16>
      tpu.vector_store %arg12[%c0_58, %c0_59], %95 {strides = array<i32>} : memref<24x128xbf16, #tpu.memory_space<vmem>>, vector<24x128xbf16>,
    } else {
    }
    %c0 = arith.constant 0 : index
    %c0_4 = arith.constant 0 : index
    %8 = vector.load %arg3[%c0, %c0_4] : memref<128x2xi32, #tpu.memory_space<vmem>>, vector<128x1xi32>
    %c0_5 = arith.constant 0 : index
    %c1 = arith.constant 1 : index
    %9 = vector.load %arg3[%c0_5, %c1] : memref<128x2xi32, #tpu.memory_space<vmem>>, vector<128x1xi32>
    %c0_6 = arith.constant 0 : index
    %c0_7 = arith.constant 0 : index
    %10 = vector.load %arg4[%c0_6, %c0_7] : memref<1x128xi32, #tpu.memory_space<vmem>>, vector<1x128xi32>
    %c0_8 = arith.constant 0 : index
    %c0_9 = arith.constant 0 : index
    %11 = vector.load %arg5[%c0_8, %c0_9] : memref<1x128xf32, #tpu.memory_space<vmem>>, vector<1x128xf32>
    %12 = tpu.iota {dimensions = array<i32: 1>} : vector<128x24xi32>
    %13 = vector.broadcast %8 : vector<128x1xi32> to vector<128x24xi32>
    %14 = arith.cmpi eq, %12, %13 : vector<128x24xi32>
    %cst = arith.constant 1.000000e+00 : f32
    %cst_10 = arith.constant 0.000000e+00 : f32
    %15 = vector.broadcast %cst : f32 to vector<128x24xf32>
    %16 = vector.broadcast %cst_10 : f32 to vector<128x24xf32>
    %17 = arith.select %14, %15, %16 : vector<128x24xi1>, vector<128x24xf32>
    %18 = arith.truncf %17 : vector<128x24xf32> to vector<128x24xbf16>
    %c0_11 = arith.constant 0 : index
    %c0_12 = arith.constant 0 : index
    %19 = vector.load %arg12[%c0_11, %c0_12] : memref<24x128xbf16, #tpu.memory_space<vmem>>, vector<24x128xbf16>
    %cst_13 = arith.constant dense<0.000000e+00> : vector<128x128xf32>
    %20 = tpu.matmul %18, %19, %cst_13 {dimension_numbers = #tpu.dot_dimension_numbers<[1], [0], [0], [1], [0, 0, 1, 1], [], []>} : vector<128x24xbf16>, vector<24x128xbf16>, vector<128x128xf32> -> vector<128x128xf32>
    %21 = arith.truncf %20 : vector<128x128xf32> to vector<128x128xbf16>
    %cst_14 = arith.constant 0.000000e+00 : f32
    %22 = vector.broadcast %cst_14 : f32 to vector<128x128xf32>
    %c0_i32_15 = arith.constant 0 : i32
    %23 = vector.broadcast %c0_i32_15 : i32 to vector<128x1xi32>
    %24 = arith.cmpi eq, %9, %23 : vector<128x1xi32>
    %cst_16 = arith.constant 1.000000e+00 : f32
    %cst_17 = arith.constant 0.000000e+00 : f32
    %25 = vector.broadcast %cst_16 : f32 to vector<128x1xf32>
    %26 = vector.broadcast %cst_17 : f32 to vector<128x1xf32>
    %27 = arith.select %24, %25, %26 : vector<128x1xi1>, vector<128x1xf32>
    %28 = arith.truncf %27 : vector<128x1xf32> to vector<128x1xbf16>
    %29 = vector.broadcast %28 : vector<128x1xbf16> to vector<128x128xbf16>
    %30 = arith.mulf %21, %29 : vector<128x128xbf16>
    %c0_18 = arith.constant 0 : index
    %c0_19 = arith.constant 0 : index
    %c0_20 = arith.constant 0 : index
    %c0_21 = arith.constant 0 : index
    %31 = vector.load %arg7[%c0_18, %c0_19, %c0_20, %c0_21] : memref<1x4x128x128xbf16, #tpu.memory_space<vmem>>, vector<1x1x128x128xbf16>
    %32 = vector.shape_cast %31 : vector<1x1x128x128xbf16> to vector<128x128xbf16>
    %cst_22 = arith.constant dense<0.000000e+00> : vector<128x128xf32>
    %33 = tpu.matmul %30, %32, %cst_22 {dimension_numbers = #tpu.dot_dimension_numbers<[1], [0], [0], [1], [0, 0, 1, 1], [], []>} : vector<128x128xbf16>, vector<128x128xbf16>, vector<128x128xf32> -> vector<128x128xf32>
    %34 = arith.addf %22, %33 : vector<128x128xf32>
    %c1_i32 = arith.constant 1 : i32
    %35 = vector.broadcast %c1_i32 : i32 to vector<128x1xi32>
    %36 = arith.cmpi eq, %9, %35 : vector<128x1xi32>
    %cst_23 = arith.constant 1.000000e+00 : f32
    %cst_24 = arith.constant 0.000000e+00 : f32
    %37 = vector.broadcast %cst_23 : f32 to vector<128x1xf32>
    %38 = vector.broadcast %cst_24 : f32 to vector<128x1xf32>
    %39 = arith.select %36, %37, %38 : vector<128x1xi1>, vector<128x1xf32>
    %40 = arith.truncf %39 : vector<128x1xf32> to vector<128x1xbf16>
    %41 = vector.broadcast %40 : vector<128x1xbf16> to vector<128x128xbf16>
    %42 = arith.mulf %21, %41 : vector<128x128xbf16>
    %c0_25 = arith.constant 0 : index
    %c1_26 = arith.constant 1 : index
    %c0_27 = arith.constant 0 : index
    %c0_28 = arith.constant 0 : index
    %43 = vector.load %arg7[%c0_25, %c1_26, %c0_27, %c0_28] : memref<1x4x128x128xbf16, #tpu.memory_space<vmem>>, vector<1x1x128x128xbf16>
    %44 = vector.shape_cast %43 : vector<1x1x128x128xbf16> to vector<128x128xbf16>
    %cst_29 = arith.constant dense<0.000000e+00> : vector<128x128xf32>
    %45 = tpu.matmul %42, %44, %cst_29 {dimension_numbers = #tpu.dot_dimension_numbers<[1], [0], [0], [1], [0, 0, 1, 1], [], []>} : vector<128x128xbf16>, vector<128x128xbf16>, vector<128x128xf32> -> vector<128x128xf32>
    %46 = arith.addf %34, %45 : vector<128x128xf32>
    %c2_i32 = arith.constant 2 : i32
    %47 = vector.broadcast %c2_i32 : i32 to vector<128x1xi32>
    %48 = arith.cmpi eq, %9, %47 : vector<128x1xi32>
    %cst_30 = arith.constant 1.000000e+00 : f32
    %cst_31 = arith.constant 0.000000e+00 : f32
    %49 = vector.broadcast %cst_30 : f32 to vector<128x1xf32>
    %50 = vector.broadcast %cst_31 : f32 to vector<128x1xf32>
    %51 = arith.select %48, %49, %50 : vector<128x1xi1>, vector<128x1xf32>
    %52 = arith.truncf %51 : vector<128x1xf32> to vector<128x1xbf16>
    %53 = vector.broadcast %52 : vector<128x1xbf16> to vector<128x128xbf16>
    %54 = arith.mulf %21, %53 : vector<128x128xbf16>
    %c0_32 = arith.constant 0 : index
    %c2 = arith.constant 2 : index
    %c0_33 = arith.constant 0 : index
    %c0_34 = arith.constant 0 : index
    %55 = vector.load %arg7[%c0_32, %c2, %c0_33, %c0_34] : memref<1x4x128x128xbf16, #tpu.memory_space<vmem>>, vector<1x1x128x128xbf16>
    %56 = vector.shape_cast %55 : vector<1x1x128x128xbf16> to vector<128x128xbf16>
    %cst_35 = arith.constant dense<0.000000e+00> : vector<128x128xf32>
    %57 = tpu.matmul %54, %56, %cst_35 {dimension_numbers = #tpu.dot_dimension_numbers<[1], [0], [0], [1], [0, 0, 1, 1], [], []>} : vector<128x128xbf16>, vector<128x128xbf16>, vector<128x128xf32> -> vector<128x128xf32>
    %58 = arith.addf %46, %57 : vector<128x128xf32>
    %c3_i32 = arith.constant 3 : i32
    %59 = vector.broadcast %c3_i32 : i32 to vector<128x1xi32>
    %60 = arith.cmpi eq, %9, %59 : vector<128x1xi32>
    %cst_36 = arith.constant 1.000000e+00 : f32
    %cst_37 = arith.constant 0.000000e+00 : f32
    %61 = vector.broadcast %cst_36 : f32 to vector<128x1xf32>
    %62 = vector.broadcast %cst_37 : f32 to vector<128x1xf32>
    %63 = arith.select %60, %61, %62 : vector<128x1xi1>, vector<128x1xf32>
    %64 = arith.truncf %63 : vector<128x1xf32> to vector<128x1xbf16>
    %65 = vector.broadcast %64 : vector<128x1xbf16> to vector<128x128xbf16>
    %66 = arith.mulf %21, %65 : vector<128x128xbf16>
    %c0_38 = arith.constant 0 : index
    %c3 = arith.constant 3 : index
    %c0_39 = arith.constant 0 : index
    %c0_40 = arith.constant 0 : index
    %67 = vector.load %arg7[%c0_38, %c3, %c0_39, %c0_40] : memref<1x4x128x128xbf16, #tpu.memory_space<vmem>>, vector<1x1x128x128xbf16>
    %68 = vector.shape_cast %67 : vector<1x1x128x128xbf16> to vector<128x128xbf16>
    %cst_41 = arith.constant dense<0.000000e+00> : vector<128x128xf32>
    %69 = tpu.matmul %66, %68, %cst_41 {dimension_numbers = #tpu.dot_dimension_numbers<[1], [0], [0], [1], [0, 0, 1, 1], [], []>} : vector<128x128xbf16>, vector<128x128xbf16>, vector<128x128xf32> -> vector<128x128xf32>
    %70 = arith.addf %58, %69 : vector<128x128xf32>
    %71 = arith.truncf %70 : vector<128x128xf32> to vector<128x128xbf16>
    %72 = tpu.iota {dimensions = array<i32: 0>} : vector<24x128xi32>
    %73 = vector.broadcast %10 : vector<1x128xi32> to vector<24x128xi32>
    %74 = arith.cmpi eq, %72, %73 : vector<24x128xi32>
    %cst_42 = arith.constant 0.000000e+00 : f32
    %75 = vector.shape_cast %11 : vector<1x128xf32> to vector<1x128xf32>
    %76 = vector.broadcast %75 : vector<1x128xf32> to vector<24x128xf32>
    %77 = vector.broadcast %cst_42 : f32 to vector<24x128xf32>
    %78 = arith.select %74, %76, %77 : vector<24x128xi1>, vector<24x128xf32>
    %79 = arith.truncf %78 : vector<24x128xf32> to vector<24x128xbf16>
    %c0_43 = arith.constant 0 : index
    %c0_44 = arith.constant 0 : index
    %80 = vector.load %arg11[%c0_43, %c0_44] : memref<24x128xf32, #tpu.memory_space<vmem>>, vector<24x128xf32>
    %cst_45 = arith.constant dense<0.000000e+00> : vector<24x128xf32>
    %81 = tpu.matmul %79, %71, %cst_45 {dimension_numbers = #tpu.dot_dimension_numbers<[1], [0], [0], [1], [0, 0, 1, 1], [], []>} : vector<24x128xbf16>, vector<128x128xbf16>, vector<24x128xf32> -> vector<24x128xf32>
    %82 = arith.addf %80, %81 : vector<24x128xf32>
    %c0_46 = arith.constant 0 : index
    %c0_47 = arith.constant 0 : index
    %83 = vector.load %arg11[%c0_46, %c0_47] : memref<24x128xf32, #tpu.memory_space<vmem>>, vector<24x128xf32>
    tpu.vector_store %arg11[%c0_46, %c0_47], %82 {strides = array<i32>} : memref<24x128xf32, #tpu.memory_space<vmem>>, vector<24x128xf32>,
    %c2_i32_48 = arith.constant 2 : i32
    %84 = arith.cmpi eq, %arg1, %c2_i32_48 : i32
    %85 = arith.extui %84 : i1 to i32
    %c0_i32_49 = arith.constant 0 : i32
    %86 = arith.cmpi ne, %85, %c0_i32_49 : i32
    scf.if %86 {
      %c0_53 = arith.constant 0 : index
      %c0_54 = arith.constant 0 : index
      %92 = vector.load %arg11[%c0_53, %c0_54] : memref<24x128xf32, #tpu.memory_space<vmem>>, vector<24x128xf32>
      %c0_55 = arith.constant 0 : index
      %c0_56 = arith.constant 0 : index
      %c0_57 = arith.constant 0 : index
      %93 = vector.load %arg8[%c0_55, %c0_56, %c0_57] : memref<1x1x128xf32, #tpu.memory_space<vmem>>, vector<1x1x128xf32>
      %94 = vector.shape_cast %93 : vector<1x1x128xf32> to vector<1x128xf32>
      %95 = vector.broadcast %94 : vector<1x128xf32> to vector<24x128xf32>
      %96 = arith.addf %92, %95 : vector<24x128xf32>
      %cst_58 = arith.constant 0.000000e+00 : f32
      %97 = vector.broadcast %cst_58 : f32 to vector<24x128xf32>
      %98 = arith.maximumf %96, %97 : vector<24x128xf32>
      %c0_59 = arith.constant 0 : index
      %c0_60 = arith.constant 0 : index
      %99 = vector.load %arg9[%c0_59, %c0_60] : memref<24x128xf32, #tpu.memory_space<vmem>>, vector<24x128xf32>
      tpu.vector_store %arg9[%c0_59, %c0_60], %98 {strides = array<i32>} : memref<24x128xf32, #tpu.memory_space<vmem>>, vector<24x128xf32>,
    } else {
    }
    %c1_i32_50 = arith.constant 1 : i32
    %87 = arith.cmpi eq, %arg0, %c1_i32_50 : i32
    %c2_i32_51 = arith.constant 2 : i32
    %88 = arith.cmpi eq, %arg1, %c2_i32_51 : i32
    %89 = arith.andi %87, %88 : i1
    %90 = arith.extui %89 : i1 to i32
    %c0_i32_52 = arith.constant 0 : i32
    %91 = arith.cmpi ne, %90, %c0_i32_52 : i32
    scf.if %91 {
      %92 = tpu.iota {dimensions = array<i32: 0>} : vector<8x24xi32>
      %c0_53 = arith.constant 0 : index
      %c0_54 = arith.constant 0 : index
      %93 = vector.load %arg6[%c0_53, %c0_54] : memref<1x24xi32, #tpu.memory_space<vmem>>, vector<1x24xi32>
      %94 = vector.broadcast %93 : vector<1x24xi32> to vector<8x24xi32>
      %95 = arith.cmpi eq, %92, %94 : vector<8x24xi32>
      %cst_55 = arith.constant 1.000000e+00 : f32
      %cst_56 = arith.constant 0.000000e+00 : f32
      %96 = vector.broadcast %cst_55 : f32 to vector<8x24xf32>
      %97 = vector.broadcast %cst_56 : f32 to vector<8x24xf32>
      %98 = arith.select %95, %96, %97 : vector<8x24xi1>, vector<8x24xf32>
      %99 = arith.truncf %98 : vector<8x24xf32> to vector<8x24xbf16>
      %c0_57 = arith.constant 0 : index
      %c0_58 = arith.constant 0 : index
      %100 = vector.load %arg9[%c0_57, %c0_58] : memref<24x128xf32, #tpu.memory_space<vmem>>, vector<24x128xf32>
      %101 = arith.truncf %100 : vector<24x128xf32> to vector<24x128xbf16>
      %cst_59 = arith.constant dense<0.000000e+00> : vector<8x128xf32>
      %102 = tpu.matmul %99, %101, %cst_59 {dimension_numbers = #tpu.dot_dimension_numbers<[1], [0], [0], [1], [0, 0, 1, 1], [], []>} : vector<8x24xbf16>, vector<24x128xbf16>, vector<8x128xf32> -> vector<8x128xf32>
      %c0_60 = arith.constant 0 : index
      %c0_61 = arith.constant 0 : index
      %103 = vector.load %arg10[%c0_60, %c0_61] : memref<8x128xf32, #tpu.memory_space<vmem>>, vector<8x128xf32>
      tpu.vector_store %arg10[%c0_60, %c0_61], %102 {strides = array<i32>} : memref<8x128xf32, #tpu.memory_space<vmem>>, vector<8x128xf32>,
    } else {
    }
    return
  }
  func.func @transform_1(%arg0: i32, %arg1: i32) -> (i32, i32) {
    %c0_i32 = arith.constant 0 : i32
    %c0_i32_0 = arith.constant 0 : i32
    return %arg1, %c0_i32 : i32, i32
  }
  func.func @transform_2(%arg0: i32, %arg1: i32) -> (i32, i32) {
    %c0_i32 = arith.constant 0 : i32
    %c0_i32_0 = arith.constant 0 : i32
    return %c0_i32, %arg1 : i32, i32
  }
  func.func @transform_3(%arg0: i32, %arg1: i32) -> (i32, i32) {
    %c0_i32 = arith.constant 0 : i32
    %c0_i32_0 = arith.constant 0 : i32
    return %c0_i32, %arg1 : i32, i32
  }
  func.func @transform_4(%arg0: i32, %arg1: i32) -> (i32, i32) {
    %c0_i32 = arith.constant 0 : i32
    %c0_i32_0 = arith.constant 0 : i32
    %c0_i32_1 = arith.constant 0 : i32
    return %c0_i32, %c0_i32_0 : i32, i32
  }
  func.func @transform_5(%arg0: i32, %arg1: i32) -> (i32, i32, i32, i32) {
    %c0_i32 = arith.constant 0 : i32
    %c0_i32_0 = arith.constant 0 : i32
    %c0_i32_1 = arith.constant 0 : i32
    %c0_i32_2 = arith.constant 0 : i32
    return %arg0, %c0_i32, %c0_i32_0, %c0_i32_1 : i32, i32, i32, i32
  }
  func.func @transform_6(%arg0: i32, %arg1: i32) -> (i32, i32, i32) {
    %c0_i32 = arith.constant 0 : i32
    %c0_i32_0 = arith.constant 0 : i32
    %c0_i32_1 = arith.constant 0 : i32
    return %arg0, %c0_i32, %c0_i32_0 : i32, i32, i32
  }
  func.func @transform_7(%arg0: i32, %arg1: i32) -> (i32, i32) {
    %c0_i32 = arith.constant 0 : i32
    %c0_i32_0 = arith.constant 0 : i32
    %c0_i32_1 = arith.constant 0 : i32
    return %c0_i32, %c0_i32_0 : i32, i32
  }
  func.func @transform_8(%arg0: i32, %arg1: i32) -> (i32, i32) {
    %c0_i32 = arith.constant 0 : i32
    %c0_i32_0 = arith.constant 0 : i32
    %c0_i32_1 = arith.constant 0 : i32
    return %c0_i32, %c0_i32_0 : i32, i32
  }
}

</mosaic_0001>

<llo_original>
// kernel: tpu_custom_call.1
$region0: #{tpu_custom_call.1}
  #allocation0 [shape = 'u32[]', space=smem, size = 0x4, offset = 0x4, fixed_abs, tag = 'smem constant byte address 0x4 - core index']
  #allocation1 [shape = 'u32[72,128]{1,0:T(1,128)}', space=vmem, size = 0x9000, scoped, tag = 'internal scratch']
  #allocation2 [shape = 'f32[24,128]{1,0:T(8,128)}', space=vmem, size = 0x3000, scoped, tag = 'scratch operand']
  #allocation3 [shape = 'bf16[24,128]{1,0:T(8,128)(2,1)}', space=vmem, size = 0x1800, scoped, tag = 'scratch operand']
  #allocation4 [shape = 's32[1]{0}', space=sflag, size = 0x4, scoped, tag = 'scratch operand']
  #allocation11 [shape = 's32[]', space=sflag, size = 0x4, offset = 0, fixed_abs, tag = 'sflag constant byte address 0x0 - dummy sync flag']
  %s0 = inlined_call_operand.vmem [shape: f32[24,128], index: 0, kind: input, shape index: {}]
  %s1 = inlined_call_operand.vmem [shape: s32[384,2], index: 1, kind: input, shape index: {}]
  %s2 = inlined_call_operand.vmem [shape: s32[1,384], index: 2, kind: input, shape index: {}]
  %s3 = inlined_call_operand.vmem [shape: f32[1,384], index: 3, kind: input, shape index: {}]
  %s4 = inlined_call_operand.vmem [shape: s32[1,24], index: 4, kind: input, shape index: {}]
  %s5 = inlined_call_operand.hbm [shape: bf16[2,4,128,128], index: 5, kind: input, shape index: {}]
  %s6 = inlined_call_operand.vmem [shape: f32[2,1,128], index: 6, kind: input, shape index: {}]
  %s7 = inlined_call_operand.hbm [shape: f32[24,128], index: 7, kind: output, shape index: {0}]
  %s8 = inlined_call_operand.hbm [shape: f32[8,128], index: 8, kind: output, shape index: {1}]
  %9 = xla_tuple %s7, %s8
  %s10 = sld [smem:[#allocation0]]
  $region104: #{tpu_custom_call.1} parent=0
    _
  %s12 = ssub.s32 1, %s10
  %s13 = scalar_select 0, %s12, %s10
  $region1: #{tpu_custom_call.1} parent=0
    #allocation5 [shape = 'u8[262144]{0}', space=vmem, size = 0x40000, scoped, tag = 'input window, operand 5']
    #allocation6 [shape = 's32[2]{0}', space=sflag, size = 0x8, scoped, tag = 'scoped memory for tpu_custom_call.1']
    #allocation7 [shape = 's32[2]{0}', space=sflag, size = 0x8, scoped, tag = 'scoped memory for tpu_custom_call.1']
    #allocation8 [shape = 'u8[12288]{0}', space=vmem, size = 0x3000, scoped, tag = 'output window, operand 0, single buffered']
    #allocation9 [shape = 'u8[4096]{0}', space=vmem, size = 0x1000, scoped, tag = 'output window, operand 1, single buffered']
    #allocation10 [shape = 's32[1]{0}', space=sflag, size = 0x4, scoped, tag = 'scoped memory for tpu_custom_call.1']
    %14 = vsyncpa [#allocation6], 0
    %s15 = scalar_lea.sflag [#allocation6], 1
    %16 = vsyncpa %s15, 0
    %17 = vsyncpa [#allocation7], 0
    %18 = vsyncpa [#allocation10], 0
    loop: start=0, step=1, limit=8
    $region2: #{tpu_custom_call.1} parent=1 // loop_pre_header
      _
    $region3: #{tpu_custom_call.1} parent=1 // loop_header
      %s20 = sphi 0, %s24
      %p21 = scmp.ge.s32.totalorder %s20, 8
      %s27 = sphi 0, %s39
      %s28 = sphi 0, %s35
      %s29 = sphi 0, %s27
      %s30 = sphi 0, %s28
      %s31 = sphi 0, %s29
      %s32 = sphi 0, %s30
      %s42 = sphi 0, %s44
      %s45 = sphi 0, %s42
      %s46 = sphi 0, %s45
      %s62 = sphi 0, %s46
      %s68 = sphi 0, %s70
      %s71 = sphi 0, %s68
      %s72 = sphi 0, %s71
      %s88 = sphi 0, %s72
      %s94 = sphi 0, %s96
      %s97 = sphi 0, %s94
      %s98 = sphi 0, %s97
      %s114 = sphi 0, %s98
      %s118 = sphi 0, %s118
      %s120 = sphi 0, %s118
      %s121 = sphi 0, %s120
      %s135 = sphi 0, %s121
      %s141 = sphi 0, %s143
      %s144 = sphi 0, %s141
      %s145 = sphi 0, %s144
      %s161 = sphi 0, %s145
      %s167 = sphi 0, %s169
      %s170 = sphi 0, %s167
      %s171 = sphi 0, %s170
      %s187 = sphi 0, %s171
      %s191 = sphi 0, %s191
      %s193 = sphi 0, %s191
      %s194 = sphi 0, %s193
      %s208 = sphi 0, %s194
      %s212 = sphi 0, %s212
      %s214 = sphi 0, %s212
      %s215 = sphi 0, %s214
      %s229 = sphi 0, %s215
    $region4: #{tpu_custom_call.1} parent=1 // loop_header_branch
      %23 = sbr.rel (%p21) target = $region8
    $region5: #{tpu_custom_call.1} parent=1 // loop_body
      %s25 = ssub.s32 %s20, 1
      %s26 = ssub.s32 %s20, 2
      %s33 = sadd.s32 1, %s28
      %p34 = scmp.ge.s32.totalorder %s33, 3
      %s35 = scalar_select %p34, 0, %s33
      %s36 = sadd.s32 1, %s27
      %s37 = scalar_select %p34, %s36, %s27
      %p38 = scmp.ge.s32.totalorder %s37, 2
      %s39 = scalar_select %p38, 0, %s37
      %s40 = ssub.s32 %s28, %s35
      %p41 = scmp.eq.s32.totalorder %s40, 0
      %s43 = sadd.s32 %s42, 1
      %s44 = scalar_select %p41, %s42, %s43
      %p47 = pneg %p41
      %p48 = scmp.eq.s32.totalorder %s20, 5
      %p49 = por %p47, %p48
      %p50 = scmp.ne.s32.totalorder %s42, %s45
      %p51 = scmp.eq.s32.totalorder %s20, 0
      %p52 = por %p50, %p51
      %p53 = scmp.ne.s32.totalorder %s42, %s45
      %p54 = scmp.eq.s32.totalorder %s25, 5
      %p55 = por %p53, %p54
      %p56 = scmp.ne.s32.totalorder %s45, %s46
      %p57 = scmp.eq.s32.totalorder %s25, 0
      %p58 = por %p56, %p57
      %p59 = scmp.ne.s32.totalorder %s45, %s46
      %p60 = scmp.eq.s32.totalorder %s26, 5
      %p61 = por %p59, %p60
      %p63 = scmp.ne.s32.totalorder %s46, %s62
      %p64 = scmp.eq.s32.totalorder %s26, 0
      %p65 = por %p63, %p64
      %s66 = ssub.s32 %s28, %s35
      %p67 = scmp.eq.s32.totalorder %s66, 0
      %s69 = sadd.s32 %s68, 1
      %s70 = scalar_select %p67, %s68, %s69
      %p73 = pneg %p67
      %p74 = scmp.eq.s32.totalorder %s20, 5
      %p75 = por %p73, %p74
      %p76 = scmp.ne.s32.totalorder %s68, %s71
      %p77 = scmp.eq.s32.totalorder %s20, 0
      %p78 = por %p76, %p77
      %p79 = scmp.ne.s32.totalorder %s68, %s71
      %p80 = scmp.eq.s32.totalorder %s25, 5
      %p81 = por %p79, %p80
      %p82 = scmp.ne.s32.totalorder %s71, %s72
      %p83 = scmp.eq.s32.totalorder %s25, 0
      %p84 = por %p82, %p83
      %p85 = scmp.ne.s32.totalorder %s71, %s72
      %p86 = scmp.eq.s32.totalorder %s26, 5
      %p87 = por %p85, %p86
      %p89 = scmp.ne.s32.totalorder %s72, %s88
      %p90 = scmp.eq.s32.totalorder %s26, 0
      %p91 = por %p89, %p90
      %s92 = ssub.s32 %s28, %s35
      %p93 = scmp.eq.s32.totalorder %s92, 0
      %s95 = sadd.s32 %s94, 1
      %s96 = scalar_select %p93, %s94, %s95
      %p99 = pneg %p93
      %p100 = scmp.eq.s32.totalorder %s20, 5
      %p101 = por %p99, %p100
      %p102 = scmp.ne.s32.totalorder %s94, %s97
      %p103 = scmp.eq.s32.totalorder %s20, 0
      %p104 = por %p102, %p103
      %p105 = scmp.ne.s32.totalorder %s94, %s97
      %p106 = scmp.eq.s32.totalorder %s25, 5
      %p107 = por %p105, %p106
      %p108 = scmp.ne.s32.totalorder %s97, %s98
      %p109 = scmp.eq.s32.totalorder %s25, 0
      %p110 = por %p108, %p109
      %p111 = scmp.ne.s32.totalorder %s97, %s98
      %p112 = scmp.eq.s32.totalorder %s26, 5
      %p113 = por %p111, %p112
      %p115 = scmp.ne.s32.totalorder %s98, %s114
      %p116 = scmp.eq.s32.totalorder %s26, 0
      %p117 = por %p115, %p116
      %s119 = sadd.s32 %s118, 1
      %p122 = scmp.eq.s32.totalorder %s20, 5
      %p123 = scmp.ne.s32.totalorder %s118, %s120
      %p124 = scmp.eq.s32.totalorder %s20, 0
      %p125 = por %p123, %p124
      %p126 = scmp.ne.s32.totalorder %s118, %s120
      %p127 = scmp.eq.s32.totalorder %s25, 5
      %p128 = por %p126, %p127
      %p129 = scmp.ne.s32.totalorder %s120, %s121
      %p130 = scmp.eq.s32.totalorder %s25, 0
      %p131 = por %p129, %p130
      %p132 = scmp.ne.s32.totalorder %s120, %s121
      %p133 = scmp.eq.s32.totalorder %s26, 5
      %p134 = por %p132, %p133
      %p136 = scmp.ne.s32.totalorder %s121, %s135
      %p137 = scmp.eq.s32.totalorder %s26, 0
      %p138 = por %p136, %p137
      %s139 = ssub.s32 %s27, %s39
      %p140 = scmp.eq.s32.totalorder %s139, 0
      %s142 = sadd.s32 %s141, 1
      %s143 = scalar_select %p140, %s141, %s142
      %p146 = pneg %p140
      %p147 = scmp.eq.s32.totalorder %s20, 5
      %p148 = por %p146, %p147
      %p149 = scmp.ne.s32.totalorder %s141, %s144
      %p150 = scmp.eq.s32.totalorder %s20, 0
      %p151 = por %p149, %p150
      %p152 = scmp.ne.s32.totalorder %s141, %s144
      %p153 = scmp.eq.s32.totalorder %s25, 5
      %p154 = por %p152, %p153
      %p155 = scmp.ne.s32.totalorder %s144, %s145
      %p156 = scmp.eq.s32.totalorder %s25, 0
      %p157 = por %p155, %p156
      %p158 = scmp.ne.s32.totalorder %s144, %s145
      %p159 = scmp.eq.s32.totalorder %s26, 5
      %p160 = por %p158, %p159
      %p162 = scmp.ne.s32.totalorder %s145, %s161
      %p163 = scmp.eq.s32.totalorder %s26, 0
      %p164 = por %p162, %p163
      %s165 = ssub.s32 %s27, %s39
      %p166 = scmp.eq.s32.totalorder %s165, 0
      %s168 = sadd.s32 %s167, 1
      %s169 = scalar_select %p166, %s167, %s168
      %p172 = pneg %p166
      %p173 = scmp.eq.s32.totalorder %s20, 5
      %p174 = por %p172, %p173
      %p175 = scmp.ne.s32.totalorder %s167, %s170
      %p176 = scmp.eq.s32.totalorder %s20, 0
      %p177 = por %p175, %p176
      %p178 = scmp.ne.s32.totalorder %s167, %s170
      %p179 = scmp.eq.s32.totalorder %s25, 5
      %p180 = por %p178, %p179
      %p181 = scmp.ne.s32.totalorder %s170, %s171
      %p182 = scmp.eq.s32.totalorder %s25, 0
      %p183 = por %p181, %p182
      %p184 = scmp.ne.s32.totalorder %s170, %s171
      %p185 = scmp.eq.s32.totalorder %s26, 5
      %p186 = por %p184, %p185
      %p188 = scmp.ne.s32.totalorder %s171, %s187
      %p189 = scmp.eq.s32.totalorder %s26, 0
      %p190 = por %p188, %p189
      %s192 = sadd.s32 %s191, 1
      %p195 = scmp.eq.s32.totalorder %s20, 5
      %p196 = scmp.ne.s32.totalorder %s191, %s193
      %p197 = scmp.eq.s32.totalorder %s20, 0
      %p198 = por %p196, %p197
      %p199 = scmp.ne.s32.totalorder %s191, %s193
      %p200 = scmp.eq.s32.totalorder %s25, 5
      %p201 = por %p199, %p200
      %p202 = scmp.ne.s32.totalorder %s193, %s194
      %p203 = scmp.eq.s32.totalorder %s25, 0
      %p204 = por %p202, %p203
      %p205 = scmp.ne.s32.totalorder %s193, %s194
      %p206 = scmp.eq.s32.totalorder %s26, 5
      %p207 = por %p205, %p206
      %p209 = scmp.ne.s32.totalorder %s194, %s208
      %p210 = scmp.eq.s32.totalorder %s26, 0
      %p211 = por %p209, %p210
      %s213 = sadd.s32 %s212, 1
      %p216 = scmp.eq.s32.totalorder %s20, 5
      %p217 = scmp.ne.s32.totalorder %s212, %s214
      %p218 = scmp.eq.s32.totalorder %s20, 0
      %p219 = por %p217, %p218
      %p220 = scmp.ne.s32.totalorder %s212, %s214
      %p221 = scmp.eq.s32.totalorder %s25, 5
      %p222 = por %p220, %p221
      %p223 = scmp.ne.s32.totalorder %s214, %s215
      %p224 = scmp.eq.s32.totalorder %s25, 0
      %p225 = por %p223, %p224
      %p226 = scmp.ne.s32.totalorder %s214, %s215
      %p227 = scmp.eq.s32.totalorder %s26, 5
      %p228 = por %p226, %p227
      %p230 = scmp.ne.s32.totalorder %s215, %s229
      %p231 = scmp.eq.s32.totalorder %s26, 0
      %p232 = por %p230, %p231
      %p233 = scmp.le.s32.totalorder 1, %s20
      %p234 = scmp.lt.s32.totalorder %s20, 7
      %p235 = pnand %p233, %p234
      %p236 = pneg %p235
      // Predicated region
      $region9: #{tpu_custom_call.1} parent=5 // pred_check
        _
      $region10: #{tpu_custom_call.1} parent=5 // pred_check_branch
        %238 = sbr.rel (%p235) target = $region12
      $region11: #{tpu_custom_call.1} parent=5 // pred_region
        %s239 = ssub.s32 %s20, 1
        // Predicated region
        $region13: #{tpu_custom_call.1} parent=11 // pred_check
          %p240 = pneg %p131
        $region14: #{tpu_custom_call.1} parent=11 // pred_check_branch
          %242 = sbr.rel (%p240) target = $region16
        $region15: #{tpu_custom_call.1} parent=11 // pred_region
          _
        $region16: #{tpu_custom_call.1} parent=11 // pred_fallthru
          _
      $region12: #{tpu_custom_call.1} parent=5 // pred_fallthru
        _
      %p243 = scmp.lt.s32.totalorder %s20, 6
      // Predicated region
      $region17: #{tpu_custom_call.1} parent=5 // pred_check
        %p244 = pneg %p243
      $region18: #{tpu_custom_call.1} parent=5 // pred_check_branch
        %246 = sbr.rel (%p244) target = $region20
      $region19: #{tpu_custom_call.1} parent=5 // pred_region
        // Predicated region
        $region21: #{tpu_custom_call.1} parent=19 // pred_check
          %p247 = pneg %p52
        $region22: #{tpu_custom_call.1} parent=19 // pred_check_branch
          %249 = sbr.rel (%p247) target = $region24
        $region23: #{tpu_custom_call.1} parent=19 // pred_region
          %s250 = smul.u32 16, %s28
          %p251 = scmp.lt.s32.totalorder %s250, 47
          %s252 = scalar_select %p251, %s250, 47
          %s253 = smul.addr %s252, 8
          %s254 = scalar_lea.vmem %s1, %s253
          %s255 = smul.u32 16, %s28
        $region24: #{tpu_custom_call.1} parent=19 // pred_fallthru
          _
        // Predicated region
        $region25: #{tpu_custom_call.1} parent=19 // pred_check
          %p256 = pneg %p78
        $region26: #{tpu_custom_call.1} parent=19 // pred_check_branch
          %258 = sbr.rel (%p256) target = $region28
        $region27: #{tpu_custom_call.1} parent=19 // pred_region
          %p259 = scmp.lt.s32.totalorder %s28, 2
          %s260 = scalar_select %p259, %s28, 2
          %s261 = scalar_lea.vmem %s2, %s260
        $region28: #{tpu_custom_call.1} parent=19 // pred_fallthru
          _
        // Predicated region
        $region29: #{tpu_custom_call.1} parent=19 // pred_check
          %p262 = pneg %p104
        $region30: #{tpu_custom_call.1} parent=19 // pred_check_branch
          %264 = sbr.rel (%p262) target = $region32
        $region31: #{tpu_custom_call.1} parent=19 // pred_region
          %p265 = scmp.lt.s32.totalorder %s28, 2
          %s266 = scalar_select %p265, %s28, 2
          %s267 = scalar_lea.vmem %s3, %s266
        $region32: #{tpu_custom_call.1} parent=19 // pred_fallthru
          _
        // Predicated region
        $region33: #{tpu_custom_call.1} parent=19 // pred_check
          %p268 = pneg %p151
        $region34: #{tpu_custom_call.1} parent=19 // pred_check_branch
          %270 = sbr.rel (%p268) target = $region36
        $region35: #{tpu_custom_call.1} parent=19 // pred_region
          %s271 = sand.u32 %s141, 1
          %s272 = scalar_lea.sflag [#allocation6], %s271
          %s273 = sand.u32 %s141, 1
          %s274 = smul.addr %s273, 256
          %s275 = scalar_lea.vmem [#allocation5], %s274
          %277 = vsyncadd %s272, 0
          %s278 = smul.addr %s27, 64
          %s279 = smul.addr %s278, 4
          %s280 = scalar_lea.hbm %s5, %s279
          %s281 = sshll.u32 %s280, 4
          %s282 = int_to_ptr.hbm [resolvable:$true] %s281
          %s283 = sshll.u32 %s275, 4
          %s284 = int_to_ptr.vmem [resolvable:$true] %s283
          %289 = dma.hbm_to_vmem [thread:$0]  %s282, 4096, %s284, %s272, 64, 64, 4
        $region36: #{tpu_custom_call.1} parent=19 // pred_fallthru
          _
        // Predicated region
        $region37: #{tpu_custom_call.1} parent=19 // pred_check
          %p290 = pneg %p177
        $region38: #{tpu_custom_call.1} parent=19 // pred_check_branch
          %292 = sbr.rel (%p290) target = $region40
        $region39: #{tpu_custom_call.1} parent=19 // pred_region
          %p293 = scmp.lt.s32.totalorder %s27, 1
          %s294 = scalar_select %p293, %s27, 1
          %s295 = scalar_lea.vmem %s6, %s294
        $region40: #{tpu_custom_call.1} parent=19 // pred_fallthru
          _
      $region20: #{tpu_custom_call.1} parent=5 // pred_fallthru
        _
      %p296 = scmp.le.s32.totalorder 1, %s20
      %p297 = scmp.lt.s32.totalorder %s20, 7
      %p298 = pnand %p296, %p297
      %p299 = pneg %p298
      // Predicated region
      $region41: #{tpu_custom_call.1} parent=5 // pred_check
        _
      $region42: #{tpu_custom_call.1} parent=5 // pred_check_branch
        %301 = sbr.rel (%p298) target = $region44
      $region43: #{tpu_custom_call.1} parent=5 // pred_region
        %s302 = ssub.s32 %s20, 1
        %s303 = sand.u32 %s144, 1
        %s304 = scalar_lea.sflag [#allocation6], %s303
        %s305 = sand.u32 %s144, 1
        %s306 = smul.addr %s305, 256
        %s307 = scalar_lea.vmem [#allocation5], %s306
        // Predicated region
        $region45: #{tpu_custom_call.1} parent=43 // pred_check
          %p308 = pneg %p157
        $region46: #{tpu_custom_call.1} parent=43 // pred_check_branch
          %310 = sbr.rel (%p308) target = $region48
        $region47: #{tpu_custom_call.1} parent=43 // pred_region
          %312 = dma.done %s304, 4096
        $region48: #{tpu_custom_call.1} parent=43 // pred_fallthru
          _
        %s313 = smul.u32 16, %s30
        %p314 = scmp.lt.s32.totalorder %s313, 47
        %s315 = scalar_select %p314, %s313, 47
        %s316 = smul.addr %s315, 8
        %s317 = scalar_lea.vmem %s1, %s316
        %p318 = pneg %p58
        %p319 = pneg %p55
        %p320 = scmp.lt.s32.totalorder %s30, 2
        %s321 = scalar_select %p320, %s30, 2
        %s322 = scalar_lea.vmem %s2, %s321
        %p323 = pneg %p84
        %p324 = pneg %p81
        %p325 = scmp.lt.s32.totalorder %s30, 2
        %s326 = scalar_select %p325, %s30, 2
        %s327 = scalar_lea.vmem %s3, %s326
        %p328 = pneg %p110
        %p329 = pneg %p107
        %p330 = pneg %p131
        %p331 = pneg %p128
        %s332 = sand.u32 %s144, 1
        %s333 = scalar_lea.sflag [#allocation6], %s332
        %s334 = sand.u32 %s144, 1
        %s335 = smul.addr %s334, 256
        %s336 = scalar_lea.vmem [#allocation5], %s335
        %p337 = pneg %p157
        %p338 = pneg %p154
        %p339 = scmp.lt.s32.totalorder %s29, 1
        %s340 = scalar_select %p339, %s29, 1
        %s341 = scalar_lea.vmem %s6, %s340
        %p342 = pneg %p183
        %p343 = pneg %p180
        %p344 = pneg %p204
        %p345 = pneg %p201
        %p346 = pneg %p225
        %p347 = pneg %p222
        %s348 = smul.u32 16, %s30
        %p349 = scmp.lt.s32.totalorder %s348, 47
        %s350 = scalar_select %p349, %s348, 47
        %s351 = smul.addr %s350, 8
        %s352 = scalar_lea.vmem %s1, %s351
        %s353 = smul.u32 16, %s30
        %p354 = scmp.lt.s32.totalorder %s30, 2
        %s355 = scalar_select %p354, %s30, 2
        %s356 = scalar_lea.vmem %s2, %s355
        %p357 = scmp.lt.s32.totalorder %s30, 2
        %s358 = scalar_select %p357, %s30, 2
        %s359 = scalar_lea.vmem %s3, %s358
        %p360 = scmp.lt.s32.totalorder %s29, 1
        %s361 = scalar_select %p360, %s29, 1
        %s362 = scalar_lea.vmem %s6, %s361
        %p364 = scmp.eq.s32.totalorder %s29, 0
        %p365 = scmp.eq.s32.totalorder %s30, 0
        %p366 = pnand %p364, %p365
        %p367 = pneg %p366
        // Predicated region
        $region49: #{tpu_custom_call.1} parent=43 // pred_check
          _
        $region50: #{tpu_custom_call.1} parent=43 // pred_check_branch
          %369 = sbr.rel (%p366) target = $region52
        $region51: #{tpu_custom_call.1} parent=43 // pred_region
          // Predicated region
          $region53: #{tpu_custom_call.1} parent=51 // pred_check
            _
          $region54: #{tpu_custom_call.1} parent=51 // pred_check_branch
            %371 = sbr.rel (0) target = $region56
          $region55: #{tpu_custom_call.1} parent=51 // pred_region
            loop: start=0, step=1, limit=1
            $region57: #{tpu_custom_call.1} parent=55 // loop_pre_header
              _
            $region58: #{tpu_custom_call.1} parent=55 // loop_header
              %s373 = sphi 0, %s377
              %p374 = scmp.ge.s32.totalorder %s373, 1
              %s378 = sphi %s0, %s0
              %s379 = sphi [#allocation8], [#allocation8]
            $region59: #{tpu_custom_call.1} parent=55 // loop_header_branch
              %376 = sbr.rel (%p374) target = $region63
            $region60: #{tpu_custom_call.1} parent=55 // loop_body
              %v380 = vld [vmem:[%s378] sm:$0xff]
              %381 = vst [vmem:[%s379] sm:$0xff] %v380
              %v382 = vld [vmem:[%s378 + $0x8] sm:$0xff]
              %383 = vst [vmem:[%s379 + $0x8] sm:$0xff] %v382
              %v384 = vld [vmem:[%s378 + $0x10] sm:$0xff]
              %385 = vst [vmem:[%s379 + $0x10] sm:$0xff] %v384
            $region61: #{tpu_custom_call.1} parent=55 // loop_footer
              %s377 = sadd.s32 1, %s373
            $region62: #{tpu_custom_call.1} parent=55 // loop_footer_branch
              %372 = sbr.rel target = $region58
            $region63: #{tpu_custom_call.1} parent=55 // loop_exit
              _
          $region56: #{tpu_custom_call.1} parent=51 // pred_fallthru
            _
          // Predicated region
          $region64: #{tpu_custom_call.1} parent=51 // pred_check
            _
          $region65: #{tpu_custom_call.1} parent=51 // pred_check_branch
            %387 = sbr.rel target = $region67
          $region66: #{tpu_custom_call.1} parent=51 // pred_region
            _
          $region67: #{tpu_custom_call.1} parent=51 // pred_fallthru
            _
          // Predicated region
          $region68: #{tpu_custom_call.1} parent=51 // pred_check
            _
          $region69: #{tpu_custom_call.1} parent=51 // pred_check_branch
            %390 = sbr.rel (0) target = $region71
          $region70: #{tpu_custom_call.1} parent=51 // pred_region
            %391 = vsyncadd [#allocation4], 384
          $region71: #{tpu_custom_call.1} parent=51 // pred_fallthru
            _
          %s392 = smul.u32 24, 1
          %s393 = sshll.u32 %s392, 4
          %394 = dma.done [#allocation4], %s393
        $region52: #{tpu_custom_call.1} parent=43 // pred_fallthru
          _
        // Predicated region
        $region72: #{tpu_custom_call.1} parent=43 // pred_check
          %p395 = pneg %p365
        $region73: #{tpu_custom_call.1} parent=43 // pred_check_branch
          %397 = sbr.rel (%p395) target = $region75
        $region74: #{tpu_custom_call.1} parent=43 // pred_region
          %398 = vst [vmem:[#allocation2] sm:$0xff] 0.0
          %399 = vst [vmem:[#allocation2 + $0x8] sm:$0xff] 0.0
          %400 = vst [vmem:[#allocation2 + $0x10] sm:$0xff] 0.0
          %v401 = vld [vmem:[#allocation8] sm:$0xff]
          %v402 = vld [vmem:[#allocation8 + $0x8] sm:$0xff]
          %v403 = vld [vmem:[#allocation8 + $0x10] sm:$0xff]
          %v404 = vpack.c.bf16 %v401, %v401
          %v405 = vpack.c.bf16 %v402, %v402
          %v406 = vpack.c.bf16 %v403, %v403
          %407 = vst [vmem:[#allocation3] sm:$0xf] %v404
          %408 = vst [vmem:[#allocation3 + $0x4] sm:$0xf] %v405
          %409 = vst [vmem:[#allocation3 + $0x8] sm:$0xf] %v406
        $region75: #{tpu_custom_call.1} parent=43 // pred_fallthru
          _
        %v410 = vld [vmem:[%s352] sm:$0xff]
        %v411 = vld [vmem:[%s352 + $0x8] sm:$0xff]
        %v412 = vld [vmem:[%s352 + $0x10] sm:$0xff]
        %v413 = vld [vmem:[%s352 + $0x18] sm:$0xff]
        %v414 = vld [vmem:[%s352 + $0x20] sm:$0xff]
        %v415 = vld [vmem:[%s352 + $0x28] sm:$0xff]
        %v416 = vld [vmem:[%s352 + $0x30] sm:$0xff]
        %v417 = vld [vmem:[%s352 + $0x38] sm:$0xff]
        %v418 = vld [vmem:[%s352 + $0x40] sm:$0xff]
        %v419 = vld [vmem:[%s352 + $0x48] sm:$0xff]
        %v420 = vld [vmem:[%s352 + $0x50] sm:$0xff]
        %v421 = vld [vmem:[%s352 + $0x58] sm:$0xff]
        %v422 = vld [vmem:[%s352 + $0x60] sm:$0xff]
        %v423 = vld [vmem:[%s352 + $0x68] sm:$0xff]
        %v424 = vld [vmem:[%s352 + $0x70] sm:$0xff]
        %v425 = vld [vmem:[%s352 + $0x78] sm:$0xff]
        %v426 = vld [vmem:[%s356] sm:$0x1]
        %v427 = vld [vmem:[%s359] sm:$0x1]
        %v428 = vlaneseq
        %v429 = vand.u32 %v428, 127
        %430 = vset.pattern.permute.xlu0 0
        %431 = vperm.xlu0 %430, %v410
        %v432 = vpop.permute.xlu0 %431
        %433 = vset.pattern.permute.xlu0 0
        %434 = vperm.xlu0 %433, %v411
        %v435 = vpop.permute.xlu0 %434
        %436 = vset.pattern.permute.xlu0 0
        %437 = vperm.xlu0 %436, %v412
        %v438 = vpop.permute.xlu0 %437
        %439 = vset.pattern.permute.xlu0 0
        %440 = vperm.xlu0 %439, %v413
        %v441 = vpop.permute.xlu0 %440
        %442 = vset.pattern.permute.xlu0 0
        %443 = vperm.xlu0 %442, %v414
        %v444 = vpop.permute.xlu0 %443
        %445 = vset.pattern.permute.xlu0 0
        %446 = vperm.xlu0 %445, %v415
        %v447 = vpop.permute.xlu0 %446
        %448 = vset.pattern.permute.xlu0 0
        %449 = vperm.xlu0 %448, %v416
        %v450 = vpop.permute.xlu0 %449
        %451 = vset.pattern.permute.xlu0 0
        %452 = vperm.xlu0 %451, %v417
        %v453 = vpop.permute.xlu0 %452
        %454 = vset.pattern.permute.xlu0 0
        %455 = vperm.xlu0 %454, %v418
        %v456 = vpop.permute.xlu0 %455
        %457 = vset.pattern.permute.xlu0 0
        %458 = vperm.xlu0 %457, %v419
        %v459 = vpop.permute.xlu0 %458
        %460 = vset.pattern.permute.xlu0 0
        %461 = vperm.xlu0 %460, %v420
        %v462 = vpop.permute.xlu0 %461
        %463 = vset.pattern.permute.xlu0 0
        %464 = vperm.xlu0 %463, %v421
        %v465 = vpop.permute.xlu0 %464
        %466 = vset.pattern.permute.xlu0 0
        %467 = vperm.xlu0 %466, %v422
        %v468 = vpop.permute.xlu0 %467
        %469 = vset.pattern.permute.xlu0 0
        %470 = vperm.xlu0 %469, %v423
        %v471 = vpop.permute.xlu0 %470
        %472 = vset.pattern.permute.xlu0 0
        %473 = vperm.xlu0 %472, %v424
        %v474 = vpop.permute.xlu0 %473
        %475 = vset.pattern.permute.xlu0 0
        %476 = vperm.xlu0 %475, %v425
        %v477 = vpop.permute.xlu0 %476
        %vm478 = vcmp.eq.s32.totalorder %v429, %v432
        %vm479 = vcmp.eq.s32.totalorder %v429, %v435
        %vm480 = vcmp.eq.s32.totalorder %v429, %v438
        %vm481 = vcmp.eq.s32.totalorder %v429, %v441
        %vm482 = vcmp.eq.s32.totalorder %v429, %v444
        %vm483 = vcmp.eq.s32.totalorder %v429, %v447
        %vm484 = vcmp.eq.s32.totalorder %v429, %v450
        %vm485 = vcmp.eq.s32.totalorder %v429, %v453
        %vm486 = vcmp.eq.s32.totalorder %v429, %v456
        %vm487 = vcmp.eq.s32.totalorder %v429, %v459
        %vm488 = vcmp.eq.s32.totalorder %v429, %v462
        %vm489 = vcmp.eq.s32.totalorder %v429, %v465
        %vm490 = vcmp.eq.s32.totalorder %v429, %v468
        %vm491 = vcmp.eq.s32.totalorder %v429, %v471
        %vm492 = vcmp.eq.s32.totalorder %v429, %v474
        %vm493 = vcmp.eq.s32.totalorder %v429, %v477
        %v494 = vsel %vm478, 1.0, 0.0
        %v495 = vsel %vm479, 1.0, 0.0
        %v496 = vsel %vm480, 1.0, 0.0
        %v497 = vsel %vm481, 1.0, 0.0
        %v498 = vsel %vm482, 1.0, 0.0
        %v499 = vsel %vm483, 1.0, 0.0
        %v500 = vsel %vm484, 1.0, 0.0
        %v501 = vsel %vm485, 1.0, 0.0
        %v502 = vsel %vm486, 1.0, 0.0
        %v503 = vsel %vm487, 1.0, 0.0
        %v504 = vsel %vm488, 1.0, 0.0
        %v505 = vsel %vm489, 1.0, 0.0
        %v506 = vsel %vm490, 1.0, 0.0
        %v507 = vsel %vm491, 1.0, 0.0
        %v508 = vsel %vm492, 1.0, 0.0
        %v509 = vsel %vm493, 1.0, 0.0
        %v510 = vpack.c.bf16 %v495, %v494
        %v511 = vpack.c.bf16 %v497, %v496
        %v512 = vpack.c.bf16 %v499, %v498
        %v513 = vpack.c.bf16 %v501, %v500
        %v514 = vpack.c.bf16 %v503, %v502
        %v515 = vpack.c.bf16 %v505, %v504
        %v516 = vpack.c.bf16 %v507, %v506
        %v517 = vpack.c.bf16 %v509, %v508
        %v518 = vld [vmem:[#allocation3] sm:$0xf]
        %v519 = vld [vmem:[#allocation3 + $0x4] sm:$0xf]
        %v520 = vld [vmem:[#allocation3 + $0x8] sm:$0xf]
        %v524 = vunpack.c.l.b16 %v518
        %v525 = vunpack.c.l.b16 %v519
        %v526 = vunpack.c.l.b16 %v520
        %v527 = vpack.c.b16 %v525, %v524
        %v528 = vpack.c.b16 %v526, %v526
        %vm530 = vcmask 195584
        %v532 = vsel %vm530, %v510, 0
        %v535 = vsel %vm530, %v511, 0
        %v538 = vsel %vm530, %v512, 0
        %v541 = vsel %vm530, %v513, 0
        %v544 = vsel %vm530, %v514, 0
        %v547 = vsel %vm530, %v515, 0
        %v550 = vsel %vm530, %v516, 0
        %v553 = vsel %vm530, %v517, 0
        %vm555 = vcmask 1043456
        %v557 = vsel %vm555, %v528, 0
        %559 = vmatpush.bf16.msra.mxu0 0
        %560 = vmatpush.bf16.msra.mxu0 0
        %561 = vmatpush.bf16.msra.mxu0 0
        %562 = vmatpush.bf16.msra.mxu0 0
        %563 = vmatpush.bf16.msra.mxu0 0
        %564 = vmatpush.bf16.msra.mxu0 0
        %565 = vmatpush.bf16.msra.mxu0 %v557
        %566 = vmatpush.bf16.msra.mxu0 %v527
        %567 = vmatmul.bf16.gmra.mxu0 %v532
        %v568 = vpop.f32.mrf.mxu0
        %v569 = vadd.f32 0.0, %v568
        %v570 = vpop.f32.mrf.mxu0
        %v571 = vadd.f32 0.0, %v570
        %572 = vmatmul.bf16.gmra.mxu0 %v535
        %v573 = vpop.f32.mrf.mxu0
        %v574 = vadd.f32 0.0, %v573
        %v575 = vpop.f32.mrf.mxu0
        %v576 = vadd.f32 0.0, %v575
        %577 = vmatmul.bf16.gmra.mxu0 %v538
        %v578 = vpop.f32.mrf.mxu0
        %v579 = vadd.f32 0.0, %v578
        %v580 = vpop.f32.mrf.mxu0
        %v581 = vadd.f32 0.0, %v580
        %582 = vmatmul.bf16.gmra.mxu0 %v541
        %v583 = vpop.f32.mrf.mxu0
        %v584 = vadd.f32 0.0, %v583
        %v585 = vpop.f32.mrf.mxu0
        %v586 = vadd.f32 0.0, %v585
        %587 = vmatmul.bf16.gmra.mxu0 %v544
        %v588 = vpop.f32.mrf.mxu0
        %v589 = vadd.f32 0.0, %v588
        %v590 = vpop.f32.mrf.mxu0
        %v591 = vadd.f32 0.0, %v590
        %592 = vmatmul.bf16.gmra.mxu0 %v547
        %v593 = vpop.f32.mrf.mxu0
        %v594 = vadd.f32 0.0, %v593
        %v595 = vpop.f32.mrf.mxu0
        %v596 = vadd.f32 0.0, %v595
        %597 = vmatmul.bf16.gmra.mxu0 %v550
        %v598 = vpop.f32.mrf.mxu0
        %v599 = vadd.f32 0.0, %v598
        %v600 = vpop.f32.mrf.mxu0
        %v601 = vadd.f32 0.0, %v600
        %602 = vmatmul.bf16.gmra.mxu0 %v553
        %v603 = vpop.f32.mrf.mxu0
        %v604 = vadd.f32 0.0, %v603
        %v605 = vpop.f32.mrf.mxu0
        %v606 = vadd.f32 0.0, %v605
        %607 = vdwg.mxu0
        %v608 = vpack.c.bf16 %v569, %v569
        %v609 = vpack.c.bf16 %v571, %v571
        %v610 = vpack.c.bf16 %v574, %v574
        %v611 = vpack.c.bf16 %v576, %v576
        %v612 = vpack.c.bf16 %v579, %v579
        %v613 = vpack.c.bf16 %v581, %v581
        %v614 = vpack.c.bf16 %v584, %v584
        %v615 = vpack.c.bf16 %v586, %v586
        %v616 = vpack.c.bf16 %v589, %v589
        %v617 = vpack.c.bf16 %v591, %v591
        %v618 = vpack.c.bf16 %v594, %v594
        %v619 = vpack.c.bf16 %v596, %v596
        %v620 = vpack.c.bf16 %v599, %v599
        %v621 = vpack.c.bf16 %v601, %v601
        %v622 = vpack.c.bf16 %v604, %v604
        %v623 = vpack.c.bf16 %v606, %v606
        %vm624 = vcmp.eq.s32.totalorder %v410, 0
        %vm625 = vcmp.eq.s32.totalorder %v411, 0
        %vm626 = vcmp.eq.s32.totalorder %v412, 0
        %vm627 = vcmp.eq.s32.totalorder %v413, 0
        %vm628 = vcmp.eq.s32.totalorder %v414, 0
        %vm629 = vcmp.eq.s32.totalorder %v415, 0
        %vm630 = vcmp.eq.s32.totalorder %v416, 0
        %vm631 = vcmp.eq.s32.totalorder %v417, 0
        %vm632 = vcmp.eq.s32.totalorder %v418, 0
        %vm633 = vcmp.eq.s32.totalorder %v419, 0
        %vm634 = vcmp.eq.s32.totalorder %v420, 0
        %vm635 = vcmp.eq.s32.totalorder %v421, 0
        %vm636 = vcmp.eq.s32.totalorder %v422, 0
        %vm637 = vcmp.eq.s32.totalorder %v423, 0
        %vm638 = vcmp.eq.s32.totalorder %v424, 0
        %vm639 = vcmp.eq.s32.totalorder %v425, 0
        %v640 = vsel %vm624, 1.0, 0.0
        %v641 = vsel %vm625, 1.0, 0.0
        %v642 = vsel %vm626, 1.0, 0.0
        %v643 = vsel %vm627, 1.0, 0.0
        %v644 = vsel %vm628, 1.0, 0.0
        %v645 = vsel %vm629, 1.0, 0.0
        %v646 = vsel %vm630, 1.0, 0.0
        %v647 = vsel %vm631, 1.0, 0.0
        %v648 = vsel %vm632, 1.0, 0.0
        %v649 = vsel %vm633, 1.0, 0.0
        %v650 = vsel %vm634, 1.0, 0.0
        %v651 = vsel %vm635, 1.0, 0.0
        %v652 = vsel %vm636, 1.0, 0.0
        %v653 = vsel %vm637, 1.0, 0.0
        %v654 = vsel %vm638, 1.0, 0.0
        %v655 = vsel %vm639, 1.0, 0.0
        %v656 = vpack.c.bf16 %v640, %v640
        %v657 = vpack.c.bf16 %v641, %v641
        %v658 = vpack.c.bf16 %v642, %v642
        %v659 = vpack.c.bf16 %v643, %v643
        %v660 = vpack.c.bf16 %v644, %v644
        %v661 = vpack.c.bf16 %v645, %v645
        %v662 = vpack.c.bf16 %v646, %v646
        %v663 = vpack.c.bf16 %v647, %v647
        %v664 = vpack.c.bf16 %v648, %v648
        %v665 = vpack.c.bf16 %v649, %v649
        %v666 = vpack.c.bf16 %v650, %v650
        %v667 = vpack.c.bf16 %v651, %v651
        %v668 = vpack.c.bf16 %v652, %v652
        %v669 = vpack.c.bf16 %v653, %v653
        %v670 = vpack.c.bf16 %v654, %v654
        %v671 = vpack.c.bf16 %v655, %v655
        %673 = vset.pattern.permute.xlu0 1
        %674 = vperm.xlu0 %673, %v656
        %v675 = vpop.permute.xlu0 %674
        %v678 = vunpack.c.l.s4 839922192
        %v679 = vunpack.c.0.s8 %v678
        %v680 = vperm.slane %v675, %v679
        %682 = vset.pattern.permute.xlu0 1
        %683 = vperm.xlu0 %682, %v657
        %v684 = vpop.permute.xlu0 %683
        %v687 = vunpack.c.l.s4 839922192
        %v688 = vunpack.c.0.s8 %v687
        %v689 = vperm.slane %v684, %v688
        %691 = vset.pattern.permute.xlu0 1
        %692 = vperm.xlu0 %691, %v658
        %v693 = vpop.permute.xlu0 %692
        %v696 = vunpack.c.l.s4 839922192
        %v697 = vunpack.c.0.s8 %v696
        %v698 = vperm.slane %v693, %v697
        %700 = vset.pattern.permute.xlu0 1
        %701 = vperm.xlu0 %700, %v659
        %v702 = vpop.permute.xlu0 %701
        %v705 = vunpack.c.l.s4 839922192
        %v706 = vunpack.c.0.s8 %v705
        %v707 = vperm.slane %v702, %v706
        %709 = vset.pattern.permute.xlu0 1
        %710 = vperm.xlu0 %709, %v660
        %v711 = vpop.permute.xlu0 %710
        %v714 = vunpack.c.l.s4 839922192
        %v715 = vunpack.c.0.s8 %v714
        %v716 = vperm.slane %v711, %v715
        %718 = vset.pattern.permute.xlu0 1
        %719 = vperm.xlu0 %718, %v661
        %v720 = vpop.permute.xlu0 %719
        %v723 = vunpack.c.l.s4 839922192
        %v724 = vunpack.c.0.s8 %v723
        %v725 = vperm.slane %v720, %v724
        %727 = vset.pattern.permute.xlu0 1
        %728 = vperm.xlu0 %727, %v662
        %v729 = vpop.permute.xlu0 %728
        %v732 = vunpack.c.l.s4 839922192
        %v733 = vunpack.c.0.s8 %v732
        %v734 = vperm.slane %v729, %v733
        %736 = vset.pattern.permute.xlu0 1
        %737 = vperm.xlu0 %736, %v663
        %v738 = vpop.permute.xlu0 %737
        %v741 = vunpack.c.l.s4 839922192
        %v742 = vunpack.c.0.s8 %v741
        %v743 = vperm.slane %v738, %v742
        %745 = vset.pattern.permute.xlu0 1
        %746 = vperm.xlu0 %745, %v664
        %v747 = vpop.permute.xlu0 %746
        %v750 = vunpack.c.l.s4 839922192
        %v751 = vunpack.c.0.s8 %v750
        %v752 = vperm.slane %v747, %v751
        %754 = vset.pattern.permute.xlu0 1
        %755 = vperm.xlu0 %754, %v665
        %v756 = vpop.permute.xlu0 %755
        %v759 = vunpack.c.l.s4 839922192
        %v760 = vunpack.c.0.s8 %v759
        %v761 = vperm.slane %v756, %v760
        %763 = vset.pattern.permute.xlu0 1
        %764 = vperm.xlu0 %763, %v666
        %v765 = vpop.permute.xlu0 %764
        %v768 = vunpack.c.l.s4 839922192
        %v769 = vunpack.c.0.s8 %v768
        %v770 = vperm.slane %v765, %v769
        %772 = vset.pattern.permute.xlu0 1
        %773 = vperm.xlu0 %772, %v667
        %v774 = vpop.permute.xlu0 %773
        %v777 = vunpack.c.l.s4 839922192
        %v778 = vunpack.c.0.s8 %v777
        %v779 = vperm.slane %v774, %v778
        %781 = vset.pattern.permute.xlu0 1
        %782 = vperm.xlu0 %781, %v668
        %v783 = vpop.permute.xlu0 %782
        %v786 = vunpack.c.l.s4 839922192
        %v787 = vunpack.c.0.s8 %v786
        %v788 = vperm.slane %v783, %v787
        %790 = vset.pattern.permute.xlu0 1
        %791 = vperm.xlu0 %790, %v669
        %v792 = vpop.permute.xlu0 %791
        %v795 = vunpack.c.l.s4 839922192
        %v796 = vunpack.c.0.s8 %v795
        %v797 = vperm.slane %v792, %v796
        %799 = vset.pattern.permute.xlu0 1
        %800 = vperm.xlu0 %799, %v670
        %v801 = vpop.permute.xlu0 %800
        %v804 = vunpack.c.l.s4 839922192
        %v805 = vunpack.c.0.s8 %v804
        %v806 = vperm.slane %v801, %v805
        %808 = vset.pattern.permute.xlu0 1
        %809 = vperm.xlu0 %808, %v671
        %v810 = vpop.permute.xlu0 %809
        %v813 = vunpack.c.l.s4 839922192
        %v814 = vunpack.c.0.s8 %v813
        %v815 = vperm.slane %v810, %v814
        %v816 = vunpack.c.l.bf16 %v608
        %v817 = vunpack.c.l.bf16 %v609
        %v818 = vunpack.c.l.bf16 %v610
        %v819 = vunpack.c.l.bf16 %v611
        %v820 = vunpack.c.l.bf16 %v612
        %v821 = vunpack.c.l.bf16 %v613
        %v822 = vunpack.c.l.bf16 %v614
        %v823 = vunpack.c.l.bf16 %v615
        %v824 = vunpack.c.l.bf16 %v616
        %v825 = vunpack.c.l.bf16 %v617
        %v826 = vunpack.c.l.bf16 %v618
        %v827 = vunpack.c.l.bf16 %v619
        %v828 = vunpack.c.l.bf16 %v620
        %v829 = vunpack.c.l.bf16 %v621
        %v830 = vunpack.c.l.bf16 %v622
        %v831 = vunpack.c.l.bf16 %v623
        %v832 = vunpack.c.l.bf16 %v680
        %v833 = vunpack.c.l.bf16 %v689
        %v834 = vunpack.c.l.bf16 %v698
        %v835 = vunpack.c.l.bf16 %v707
        %v836 = vunpack.c.l.bf16 %v716
        %v837 = vunpack.c.l.bf16 %v725
        %v838 = vunpack.c.l.bf16 %v734
        %v839 = vunpack.c.l.bf16 %v743
        %v840 = vunpack.c.l.bf16 %v752
        %v841 = vunpack.c.l.bf16 %v761
        %v842 = vunpack.c.l.bf16 %v770
        %v843 = vunpack.c.l.bf16 %v779
        %v844 = vunpack.c.l.bf16 %v788
        %v845 = vunpack.c.l.bf16 %v797
        %v846 = vunpack.c.l.bf16 %v806
        %v847 = vunpack.c.l.bf16 %v815
        %v848 = vmul.f32 %v816, %v832
        %v849 = vmul.f32 %v817, %v833
        %v850 = vmul.f32 %v818, %v834
        %v851 = vmul.f32 %v819, %v835
        %v852 = vmul.f32 %v820, %v836
        %v853 = vmul.f32 %v821, %v837
        %v854 = vmul.f32 %v822, %v838
        %v855 = vmul.f32 %v823, %v839
        %v856 = vmul.f32 %v824, %v840
        %v857 = vmul.f32 %v825, %v841
        %v858 = vmul.f32 %v826, %v842
        %v859 = vmul.f32 %v827, %v843
        %v860 = vmul.f32 %v828, %v844
        %v861 = vmul.f32 %v829, %v845
        %v862 = vmul.f32 %v830, %v846
        %v863 = vmul.f32 %v831, %v847
        %v864 = vpack.c.bf16 %v849, %v848
        %v865 = vpack.c.bf16 %v851, %v850
        %v866 = vpack.c.bf16 %v853, %v852
        %v867 = vpack.c.bf16 %v855, %v854
        %v868 = vpack.c.bf16 %v857, %v856
        %v869 = vpack.c.bf16 %v859, %v858
        %v870 = vpack.c.bf16 %v861, %v860
        %v871 = vpack.c.bf16 %v863, %v862
        %v872 = vld [vmem:[%s307] sm:$0xf]
        %v873 = vld [vmem:[%s307 + $0x4] sm:$0xf]
        %v874 = vld [vmem:[%s307 + $0x8] sm:$0xf]
        %v875 = vld [vmem:[%s307 + $0xc] sm:$0xf]
        %v876 = vld [vmem:[%s307 + $0x10] sm:$0xf]
        %v877 = vld [vmem:[%s307 + $0x14] sm:$0xf]
        %v878 = vld [vmem:[%s307 + $0x18] sm:$0xf]
        %v879 = vld [vmem:[%s307 + $0x1c] sm:$0xf]
        %v880 = vld [vmem:[%s307 + $0x20] sm:$0xf]
        %v881 = vld [vmem:[%s307 + $0x24] sm:$0xf]
        %v882 = vld [vmem:[%s307 + $0x28] sm:$0xf]
        %v883 = vld [vmem:[%s307 + $0x2c] sm:$0xf]
        %v884 = vld [vmem:[%s307 + $0x30] sm:$0xf]
        %v885 = vld [vmem:[%s307 + $0x34] sm:$0xf]
        %v886 = vld [vmem:[%s307 + $0x38] sm:$0xf]
        %v887 = vld [vmem:[%s307 + $0x3c] sm:$0xf]
        %vm888 = vcmp.eq.s32.totalorder %v410, 1
        %vm889 = vcmp.eq.s32.totalorder %v411, 1
        %vm890 = vcmp.eq.s32.totalorder %v412, 1
        %vm891 = vcmp.eq.s32.totalorder %v413, 1
        %vm892 = vcmp.eq.s32.totalorder %v414, 1
        %vm893 = vcmp.eq.s32.totalorder %v415, 1
        %vm894 = vcmp.eq.s32.totalorder %v416, 1
        %vm895 = vcmp.eq.s32.totalorder %v417, 1
        %vm896 = vcmp.eq.s32.totalorder %v418, 1
        %vm897 = vcmp.eq.s32.totalorder %v419, 1
        %vm898 = vcmp.eq.s32.totalorder %v420, 1
        %vm899 = vcmp.eq.s32.totalorder %v421, 1
        %vm900 = vcmp.eq.s32.totalorder %v422, 1
        %vm901 = vcmp.eq.s32.totalorder %v423, 1
        %vm902 = vcmp.eq.s32.totalorder %v424, 1
        %vm903 = vcmp.eq.s32.totalorder %v425, 1
        %v904 = vsel %vm888, 1.0, 0.0
        %v905 = vsel %vm889, 1.0, 0.0
        %v906 = vsel %vm890, 1.0, 0.0
        %v907 = vsel %vm891, 1.0, 0.0
        %v908 = vsel %vm892, 1.0, 0.0
        %v909 = vsel %vm893, 1.0, 0.0
        %v910 = vsel %vm894, 1.0, 0.0
        %v911 = vsel %vm895, 1.0, 0.0
        %v912 = vsel %vm896, 1.0, 0.0
        %v913 = vsel %vm897, 1.0, 0.0
        %v914 = vsel %vm898, 1.0, 0.0
        %v915 = vsel %vm899, 1.0, 0.0
        %v916 = vsel %vm900, 1.0, 0.0
        %v917 = vsel %vm901, 1.0, 0.0
        %v918 = vsel %vm902, 1.0, 0.0
        %v919 = vsel %vm903, 1.0, 0.0
        %v920 = vpack.c.bf16 %v904, %v904
        %v921 = vpack.c.bf16 %v905, %v905
        %v922 = vpack.c.bf16 %v906, %v906
        %v923 = vpack.c.bf16 %v907, %v907
        %v924 = vpack.c.bf16 %v908, %v908
        %v925 = vpack.c.bf16 %v909, %v909
        %v926 = vpack.c.bf16 %v910, %v910
        %v927 = vpack.c.bf16 %v911, %v911
        %v928 = vpack.c.bf16 %v912, %v912
        %v929 = vpack.c.bf16 %v913, %v913
        %v930 = vpack.c.bf16 %v914, %v914
        %v931 = vpack.c.bf16 %v915, %v915
        %v932 = vpack.c.bf16 %v916, %v916
        %v933 = vpack.c.bf16 %v917, %v917
        %v934 = vpack.c.bf16 %v918, %v918
        %v935 = vpack.c.bf16 %v919, %v919
        %937 = vset.pattern.permute.xlu0 1
        %938 = vperm.xlu0 %937, %v920
        %v939 = vpop.permute.xlu0 %938
        %v942 = vunpack.c.l.s4 839922192
        %v943 = vunpack.c.0.s8 %v942
        %v944 = vperm.slane %v939, %v943
        %946 = vset.pattern.permute.xlu0 1
        %947 = vperm.xlu0 %946, %v921
        %v948 = vpop.permute.xlu0 %947
        %v951 = vunpack.c.l.s4 839922192
        %v952 = vunpack.c.0.s8 %v951
        %v953 = vperm.slane %v948, %v952
        %955 = vset.pattern.permute.xlu0 1
        %956 = vperm.xlu0 %955, %v922
        %v957 = vpop.permute.xlu0 %956
        %v960 = vunpack.c.l.s4 839922192
        %v961 = vunpack.c.0.s8 %v960
        %v962 = vperm.slane %v957, %v961
        %964 = vset.pattern.permute.xlu0 1
        %965 = vperm.xlu0 %964, %v923
        %v966 = vpop.permute.xlu0 %965
        %v969 = vunpack.c.l.s4 839922192
        %v970 = vunpack.c.0.s8 %v969
        %v971 = vperm.slane %v966, %v970
        %973 = vset.pattern.permute.xlu0 1
        %974 = vperm.xlu0 %973, %v924
        %v975 = vpop.permute.xlu0 %974
        %v978 = vunpack.c.l.s4 839922192
        %v979 = vunpack.c.0.s8 %v978
        %v980 = vperm.slane %v975, %v979
        %982 = vset.pattern.permute.xlu0 1
        %983 = vperm.xlu0 %982, %v925
        %v984 = vpop.permute.xlu0 %983
        %v987 = vunpack.c.l.s4 839922192
        %v988 = vunpack.c.0.s8 %v987
        %v989 = vperm.slane %v984, %v988
        %991 = vset.pattern.permute.xlu0 1
        %992 = vperm.xlu0 %991, %v926
        %v993 = vpop.permute.xlu0 %992
        %v996 = vunpack.c.l.s4 839922192
        %v997 = vunpack.c.0.s8 %v996
        %v998 = vperm.slane %v993, %v997
        %1000 = vset.pattern.permute.xlu0 1
        %1001 = vperm.xlu0 %1000, %v927
        %v1002 = vpop.permute.xlu0 %1001
        %v1005 = vunpack.c.l.s4 839922192
        %v1006 = vunpack.c.0.s8 %v1005
        %v1007 = vperm.slane %v1002, %v1006
        %1009 = vset.pattern.permute.xlu0 1
        %1010 = vperm.xlu0 %1009, %v928
        %v1011 = vpop.permute.xlu0 %1010
        %v1014 = vunpack.c.l.s4 839922192
        %v1015 = vunpack.c.0.s8 %v1014
        %v1016 = vperm.slane %v1011, %v1015
        %1018 = vset.pattern.permute.xlu0 1
        %1019 = vperm.xlu0 %1018, %v929
        %v1020 = vpop.permute.xlu0 %1019
        %v1023 = vunpack.c.l.s4 839922192
        %v1024 = vunpack.c.0.s8 %v1023
        %v1025 = vperm.slane %v1020, %v1024
        %1027 = vset.pattern.permute.xlu0 1
        %1028 = vperm.xlu0 %1027, %v930
        %v1029 = vpop.permute.xlu0 %1028
        %v1032 = vunpack.c.l.s4 839922192
        %v1033 = vunpack.c.0.s8 %v1032
        %v1034 = vperm.slane %v1029, %v1033
        %1036 = vset.pattern.permute.xlu0 1
        %1037 = vperm.xlu0 %1036, %v931
        %v1038 = vpop.permute.xlu0 %1037
        %v1041 = vunpack.c.l.s4 839922192
        %v1042 = vunpack.c.0.s8 %v1041
        %v1043 = vperm.slane %v1038, %v1042
        %1045 = vset.pattern.permute.xlu0 1
        %1046 = vperm.xlu0 %1045, %v932
        %v1047 = vpop.permute.xlu0 %1046
        %v1050 = vunpack.c.l.s4 839922192
        %v1051 = vunpack.c.0.s8 %v1050
        %v1052 = vperm.slane %v1047, %v1051
        %1054 = vset.pattern.permute.xlu0 1
        %1055 = vperm.xlu0 %1054, %v933
        %v1056 = vpop.permute.xlu0 %1055
        %v1059 = vunpack.c.l.s4 839922192
        %v1060 = vunpack.c.0.s8 %v1059
        %v1061 = vperm.slane %v1056, %v1060
        %1063 = vset.pattern.permute.xlu0 1
        %1064 = vperm.xlu0 %1063, %v934
        %v1065 = vpop.permute.xlu0 %1064
        %v1068 = vunpack.c.l.s4 839922192
        %v1069 = vunpack.c.0.s8 %v1068
        %v1070 = vperm.slane %v1065, %v1069
        %1072 = vset.pattern.permute.xlu0 1
        %1073 = vperm.xlu0 %1072, %v935
        %v1074 = vpop.permute.xlu0 %1073
        %v1077 = vunpack.c.l.s4 839922192
        %v1078 = vunpack.c.0.s8 %v1077
        %v1079 = vperm.slane %v1074, %v1078
        %v1080 = vunpack.c.l.bf16 %v944
        %v1081 = vunpack.c.l.bf16 %v953
        %v1082 = vunpack.c.l.bf16 %v962
        %v1083 = vunpack.c.l.bf16 %v971
        %v1084 = vunpack.c.l.bf16 %v980
        %v1085 = vunpack.c.l.bf16 %v989
        %v1086 = vunpack.c.l.bf16 %v998
        %v1087 = vunpack.c.l.bf16 %v1007
        %v1088 = vunpack.c.l.bf16 %v1016
        %v1089 = vunpack.c.l.bf16 %v1025
        %v1090 = vunpack.c.l.bf16 %v1034
        %v1091 = vunpack.c.l.bf16 %v1043
        %v1092 = vunpack.c.l.bf16 %v1052
        %v1093 = vunpack.c.l.bf16 %v1061
        %v1094 = vunpack.c.l.bf16 %v1070
        %v1095 = vunpack.c.l.bf16 %v1079
        %v1096 = vmul.f32 %v816, %v1080
        %v1097 = vmul.f32 %v817, %v1081
        %v1098 = vmul.f32 %v818, %v1082
        %v1099 = vmul.f32 %v819, %v1083
        %v1100 = vmul.f32 %v820, %v1084
        %v1101 = vmul.f32 %v821, %v1085
        %v1102 = vmul.f32 %v822, %v1086
        %v1103 = vmul.f32 %v823, %v1087
        %v1104 = vmul.f32 %v824, %v1088
        %v1105 = vmul.f32 %v825, %v1089
        %v1106 = vmul.f32 %v826, %v1090
        %v1107 = vmul.f32 %v827, %v1091
        %v1108 = vmul.f32 %v828, %v1092
        %v1109 = vmul.f32 %v829, %v1093
        %v1110 = vmul.f32 %v830, %v1094
        %v1111 = vmul.f32 %v831, %v1095
        %v1112 = vpack.c.bf16 %v1097, %v1096
        %v1113 = vpack.c.bf16 %v1099, %v1098
        %v1114 = vpack.c.bf16 %v1101, %v1100
        %v1115 = vpack.c.bf16 %v1103, %v1102
        %v1116 = vpack.c.bf16 %v1105, %v1104
        %v1117 = vpack.c.bf16 %v1107, %v1106
        %v1118 = vpack.c.bf16 %v1109, %v1108
        %v1119 = vpack.c.bf16 %v1111, %v1110
        %s1120 = scalar_lea.vmem %s307, 64 [#allocation5]
        %v1121 = vld [vmem:[%s1120] sm:$0xf]
        %v1122 = vld [vmem:[%s1120 + $0x4] sm:$0xf]
        %v1123 = vld [vmem:[%s1120 + $0x8] sm:$0xf]
        %v1124 = vld [vmem:[%s1120 + $0xc] sm:$0xf]
        %v1125 = vld [vmem:[%s1120 + $0x10] sm:$0xf]
        %v1126 = vld [vmem:[%s1120 + $0x14] sm:$0xf]
        %v1127 = vld [vmem:[%s1120 + $0x18] sm:$0xf]
        %v1128 = vld [vmem:[%s1120 + $0x1c] sm:$0xf]
        %v1129 = vld [vmem:[%s1120 + $0x20] sm:$0xf]
        %v1130 = vld [vmem:[%s1120 + $0x24] sm:$0xf]
        %v1131 = vld [vmem:[%s1120 + $0x28] sm:$0xf]
        %v1132 = vld [vmem:[%s1120 + $0x2c] sm:$0xf]
        %v1133 = vld [vmem:[%s1120 + $0x30] sm:$0xf]
        %v1134 = vld [vmem:[%s1120 + $0x34] sm:$0xf]
        %v1135 = vld [vmem:[%s1120 + $0x38] sm:$0xf]
        %v1136 = vld [vmem:[%s1120 + $0x3c] sm:$0xf]
        %v1153 = vunpack.c.l.b16 %v1121
        %v1154 = vunpack.c.l.b16 %v1122
        %v1155 = vunpack.c.l.b16 %v1123
        %v1156 = vunpack.c.l.b16 %v1124
        %v1157 = vunpack.c.l.b16 %v1125
        %v1158 = vunpack.c.l.b16 %v1126
        %v1159 = vunpack.c.l.b16 %v1127
        %v1160 = vunpack.c.l.b16 %v1128
        %v1161 = vunpack.c.l.b16 %v1129
        %v1162 = vunpack.c.l.b16 %v1130
        %v1163 = vunpack.c.l.b16 %v1131
        %v1164 = vunpack.c.l.b16 %v1132
        %v1165 = vunpack.c.l.b16 %v1133
        %v1166 = vunpack.c.l.b16 %v1134
        %v1167 = vunpack.c.l.b16 %v1135
        %v1168 = vunpack.c.l.b16 %v1136
        %v1169 = vpack.c.b16 %v1154, %v1153
        %v1170 = vpack.c.b16 %v1156, %v1155
        %v1171 = vpack.c.b16 %v1158, %v1157
        %v1172 = vpack.c.b16 %v1160, %v1159
        %v1173 = vpack.c.b16 %v1162, %v1161
        %v1174 = vpack.c.b16 %v1164, %v1163
        %v1175 = vpack.c.b16 %v1166, %v1165
        %v1176 = vpack.c.b16 %v1168, %v1167
        %1185 = vmatpush.bf16.msra.mxu0 %v1176
        %1186 = vmatpush.bf16.msra.mxu0 %v1175
        %1187 = vmatpush.bf16.msra.mxu0 %v1174
        %1188 = vmatpush.bf16.msra.mxu0 %v1173
        %1189 = vmatpush.bf16.msra.mxu0 %v1172
        %1190 = vmatpush.bf16.msra.mxu0 %v1171
        %1191 = vmatpush.bf16.msra.mxu0 %v1170
        %1192 = vmatpush.bf16.msra.mxu0 %v1169
        %1193 = vmatmul.bf16.gmra.mxu0 %v1112
        %v1194 = vpop.f32.mrf.mxu0
        %v1195 = vadd.f32 0.0, %v1194
        %v1196 = vpop.f32.mrf.mxu0
        %v1197 = vadd.f32 0.0, %v1196
        %1198 = vmatmul.bf16.gmra.mxu0 %v1113
        %v1199 = vpop.f32.mrf.mxu0
        %v1200 = vadd.f32 0.0, %v1199
        %v1201 = vpop.f32.mrf.mxu0
        %v1202 = vadd.f32 0.0, %v1201
        %1203 = vmatmul.bf16.gmra.mxu0 %v1114
        %v1204 = vpop.f32.mrf.mxu0
        %v1205 = vadd.f32 0.0, %v1204
        %v1206 = vpop.f32.mrf.mxu0
        %v1207 = vadd.f32 0.0, %v1206
        %1208 = vmatmul.bf16.gmra.mxu0 %v1115
        %v1209 = vpop.f32.mrf.mxu0
        %v1210 = vadd.f32 0.0, %v1209
        %v1211 = vpop.f32.mrf.mxu0
        %v1212 = vadd.f32 0.0, %v1211
        %1213 = vmatmul.bf16.gmra.mxu0 %v1116
        %v1214 = vpop.f32.mrf.mxu0
        %v1215 = vadd.f32 0.0, %v1214
        %v1216 = vpop.f32.mrf.mxu0
        %v1217 = vadd.f32 0.0, %v1216
        %1218 = vmatmul.bf16.gmra.mxu0 %v1117
        %v1219 = vpop.f32.mrf.mxu0
        %v1220 = vadd.f32 0.0, %v1219
        %v1221 = vpop.f32.mrf.mxu0
        %v1222 = vadd.f32 0.0, %v1221
        %1223 = vmatmul.bf16.gmra.mxu0 %v1118
        %v1224 = vpop.f32.mrf.mxu0
        %v1225 = vadd.f32 0.0, %v1224
        %v1226 = vpop.f32.mrf.mxu0
        %v1227 = vadd.f32 0.0, %v1226
        %1228 = vmatmul.bf16.gmra.mxu0 %v1119
        %v1229 = vpop.f32.mrf.mxu0
        %v1230 = vadd.f32 0.0, %v1229
        %v1231 = vpop.f32.mrf.mxu0
        %v1232 = vadd.f32 0.0, %v1231
        %1233 = vdwg.mxu0
        %v1250 = vunpack.c.l.b16 %v872
        %v1251 = vunpack.c.l.b16 %v873
        %v1252 = vunpack.c.l.b16 %v874
        %v1253 = vunpack.c.l.b16 %v875
        %v1254 = vunpack.c.l.b16 %v876
        %v1255 = vunpack.c.l.b16 %v877
        %v1256 = vunpack.c.l.b16 %v878
        %v1257 = vunpack.c.l.b16 %v879
        %v1258 = vunpack.c.l.b16 %v880
        %v1259 = vunpack.c.l.b16 %v881
        %v1260 = vunpack.c.l.b16 %v882
        %v1261 = vunpack.c.l.b16 %v883
        %v1262 = vunpack.c.l.b16 %v884
        %v1263 = vunpack.c.l.b16 %v885
        %v1264 = vunpack.c.l.b16 %v886
        %v1265 = vunpack.c.l.b16 %v887
        %v1266 = vpack.c.b16 %v1251, %v1250
        %v1267 = vpack.c.b16 %v1253, %v1252
        %v1268 = vpack.c.b16 %v1255, %v1254
        %v1269 = vpack.c.b16 %v1257, %v1256
        %v1270 = vpack.c.b16 %v1259, %v1258
        %v1271 = vpack.c.b16 %v1261, %v1260
        %v1272 = vpack.c.b16 %v1263, %v1262
        %v1273 = vpack.c.b16 %v1265, %v1264
        %1282 = vmatpush.bf16.msra.mxu0 %v1273
        %1283 = vmatpush.bf16.msra.mxu0 %v1272
        %1284 = vmatpush.bf16.msra.mxu0 %v1271
        %1285 = vmatpush.bf16.msra.mxu0 %v1270
        %1286 = vmatpush.bf16.msra.mxu0 %v1269
        %1287 = vmatpush.bf16.msra.mxu0 %v1268
        %1288 = vmatpush.bf16.msra.mxu0 %v1267
        %1289 = vmatpush.bf16.msra.mxu0 %v1266
        %1290 = vmatmul.bf16.gmra.mxu0 %v864
        %v1291 = vpop.f32.mrf.mxu0
        %v1292 = vadd.f32 %v1195, %v1291
        %v1293 = vpop.f32.mrf.mxu0
        %v1294 = vadd.f32 %v1197, %v1293
        %1295 = vmatmul.bf16.gmra.mxu0 %v865
        %v1296 = vpop.f32.mrf.mxu0
        %v1297 = vadd.f32 %v1200, %v1296
        %v1298 = vpop.f32.mrf.mxu0
        %v1299 = vadd.f32 %v1202, %v1298
        %1300 = vmatmul.bf16.gmra.mxu0 %v866
        %v1301 = vpop.f32.mrf.mxu0
        %v1302 = vadd.f32 %v1205, %v1301
        %v1303 = vpop.f32.mrf.mxu0
        %v1304 = vadd.f32 %v1207, %v1303
        %1305 = vmatmul.bf16.gmra.mxu0 %v867
        %v1306 = vpop.f32.mrf.mxu0
        %v1307 = vadd.f32 %v1210, %v1306
        %v1308 = vpop.f32.mrf.mxu0
        %v1309 = vadd.f32 %v1212, %v1308
        %1310 = vmatmul.bf16.gmra.mxu0 %v868
        %v1311 = vpop.f32.mrf.mxu0
        %v1312 = vadd.f32 %v1215, %v1311
        %v1313 = vpop.f32.mrf.mxu0
        %v1314 = vadd.f32 %v1217, %v1313
        %1315 = vmatmul.bf16.gmra.mxu0 %v869
        %v1316 = vpop.f32.mrf.mxu0
        %v1317 = vadd.f32 %v1220, %v1316
        %v1318 = vpop.f32.mrf.mxu0
        %v1319 = vadd.f32 %v1222, %v1318
        %1320 = vmatmul.bf16.gmra.mxu0 %v870
        %v1321 = vpop.f32.mrf.mxu0
        %v1322 = vadd.f32 %v1225, %v1321
        %v1323 = vpop.f32.mrf.mxu0
        %v1324 = vadd.f32 %v1227, %v1323
        %1325 = vmatmul.bf16.gmra.mxu0 %v871
        %v1326 = vpop.f32.mrf.mxu0
        %v1327 = vadd.f32 %v1230, %v1326
        %v1328 = vpop.f32.mrf.mxu0
        %v1329 = vadd.f32 %v1232, %v1328
        %1330 = vdwg.mxu0
        %vm1331 = vcmp.eq.s32.totalorder %v410, 2
        %vm1332 = vcmp.eq.s32.totalorder %v411, 2
        %vm1333 = vcmp.eq.s32.totalorder %v412, 2
        %vm1334 = vcmp.eq.s32.totalorder %v413, 2
        %vm1335 = vcmp.eq.s32.totalorder %v414, 2
        %vm1336 = vcmp.eq.s32.totalorder %v415, 2
        %vm1337 = vcmp.eq.s32.totalorder %v416, 2
        %vm1338 = vcmp.eq.s32.totalorder %v417, 2
        %vm1339 = vcmp.eq.s32.totalorder %v418, 2
        %vm1340 = vcmp.eq.s32.totalorder %v419, 2
        %vm1341 = vcmp.eq.s32.totalorder %v420, 2
        %vm1342 = vcmp.eq.s32.totalorder %v421, 2
        %vm1343 = vcmp.eq.s32.totalorder %v422, 2
        %vm1344 = vcmp.eq.s32.totalorder %v423, 2
        %vm1345 = vcmp.eq.s32.totalorder %v424, 2
        %vm1346 = vcmp.eq.s32.totalorder %v425, 2
        %v1347 = vsel %vm1331, 1.0, 0.0
        %v1348 = vsel %vm1332, 1.0, 0.0
        %v1349 = vsel %vm1333, 1.0, 0.0
        %v1350 = vsel %vm1334, 1.0, 0.0
        %v1351 = vsel %vm1335, 1.0, 0.0
        %v1352 = vsel %vm1336, 1.0, 0.0
        %v1353 = vsel %vm1337, 1.0, 0.0
        %v1354 = vsel %vm1338, 1.0, 0.0
        %v1355 = vsel %vm1339, 1.0, 0.0
        %v1356 = vsel %vm1340, 1.0, 0.0
        %v1357 = vsel %vm1341, 1.0, 0.0
        %v1358 = vsel %vm1342, 1.0, 0.0
        %v1359 = vsel %vm1343, 1.0, 0.0
        %v1360 = vsel %vm1344, 1.0, 0.0
        %v1361 = vsel %vm1345, 1.0, 0.0
        %v1362 = vsel %vm1346, 1.0, 0.0
        %v1363 = vpack.c.bf16 %v1347, %v1347
        %v1364 = vpack.c.bf16 %v1348, %v1348
        %v1365 = vpack.c.bf16 %v1349, %v1349
        %v1366 = vpack.c.bf16 %v1350, %v1350
        %v1367 = vpack.c.bf16 %v1351, %v1351
        %v1368 = vpack.c.bf16 %v1352, %v1352
        %v1369 = vpack.c.bf16 %v1353, %v1353
        %v1370 = vpack.c.bf16 %v1354, %v1354
        %v1371 = vpack.c.bf16 %v1355, %v1355
        %v1372 = vpack.c.bf16 %v1356, %v1356
        %v1373 = vpack.c.bf16 %v1357, %v1357
        %v1374 = vpack.c.bf16 %v1358, %v1358
        %v1375 = vpack.c.bf16 %v1359, %v1359
        %v1376 = vpack.c.bf16 %v1360, %v1360
        %v1377 = vpack.c.bf16 %v1361, %v1361
        %v1378 = vpack.c.bf16 %v1362, %v1362
        %1380 = vset.pattern.permute.xlu0 1
        %1381 = vperm.xlu0 %1380, %v1363
        %v1382 = vpop.permute.xlu0 %1381
        %v1385 = vunpack.c.l.s4 839922192
        %v1386 = vunpack.c.0.s8 %v1385
        %v1387 = vperm.slane %v1382, %v1386
        %1389 = vset.pattern.permute.xlu0 1
        %1390 = vperm.xlu0 %1389, %v1364
        %v1391 = vpop.permute.xlu0 %1390
        %v1394 = vunpack.c.l.s4 839922192
        %v1395 = vunpack.c.0.s8 %v1394
        %v1396 = vperm.slane %v1391, %v1395
        %1398 = vset.pattern.permute.xlu0 1
        %1399 = vperm.xlu0 %1398, %v1365
        %v1400 = vpop.permute.xlu0 %1399
        %v1403 = vunpack.c.l.s4 839922192
        %v1404 = vunpack.c.0.s8 %v1403
        %v1405 = vperm.slane %v1400, %v1404
        %1407 = vset.pattern.permute.xlu0 1
        %1408 = vperm.xlu0 %1407, %v1366
        %v1409 = vpop.permute.xlu0 %1408
        %v1412 = vunpack.c.l.s4 839922192
        %v1413 = vunpack.c.0.s8 %v1412
        %v1414 = vperm.slane %v1409, %v1413
        %1416 = vset.pattern.permute.xlu0 1
        %1417 = vperm.xlu0 %1416, %v1367
        %v1418 = vpop.permute.xlu0 %1417
        %v1421 = vunpack.c.l.s4 839922192
        %v1422 = vunpack.c.0.s8 %v1421
        %v1423 = vperm.slane %v1418, %v1422
        %1425 = vset.pattern.permute.xlu0 1
        %1426 = vperm.xlu0 %1425, %v1368
        %v1427 = vpop.permute.xlu0 %1426
        %v1430 = vunpack.c.l.s4 839922192
        %v1431 = vunpack.c.0.s8 %v1430
        %v1432 = vperm.slane %v1427, %v1431
        %1434 = vset.pattern.permute.xlu0 1
        %1435 = vperm.xlu0 %1434, %v1369
        %v1436 = vpop.permute.xlu0 %1435
        %v1439 = vunpack.c.l.s4 839922192
        %v1440 = vunpack.c.0.s8 %v1439
        %v1441 = vperm.slane %v1436, %v1440
        %1443 = vset.pattern.permute.xlu0 1
        %1444 = vperm.xlu0 %1443, %v1370
        %v1445 = vpop.permute.xlu0 %1444
        %v1448 = vunpack.c.l.s4 839922192
        %v1449 = vunpack.c.0.s8 %v1448
        %v1450 = vperm.slane %v1445, %v1449
        %1452 = vset.pattern.permute.xlu0 1
        %1453 = vperm.xlu0 %1452, %v1371
        %v1454 = vpop.permute.xlu0 %1453
        %v1457 = vunpack.c.l.s4 839922192
        %v1458 = vunpack.c.0.s8 %v1457
        %v1459 = vperm.slane %v1454, %v1458
        %1461 = vset.pattern.permute.xlu0 1
        %1462 = vperm.xlu0 %1461, %v1372
        %v1463 = vpop.permute.xlu0 %1462
        %v1466 = vunpack.c.l.s4 839922192
        %v1467 = vunpack.c.0.s8 %v1466
        %v1468 = vperm.slane %v1463, %v1467
        %1470 = vset.pattern.permute.xlu0 1
        %1471 = vperm.xlu0 %1470, %v1373
        %v1472 = vpop.permute.xlu0 %1471
        %v1475 = vunpack.c.l.s4 839922192
        %v1476 = vunpack.c.0.s8 %v1475
        %v1477 = vperm.slane %v1472, %v1476
        %1479 = vset.pattern.permute.xlu0 1
        %1480 = vperm.xlu0 %1479, %v1374
        %v1481 = vpop.permute.xlu0 %1480
        %v1484 = vunpack.c.l.s4 839922192
        %v1485 = vunpack.c.0.s8 %v1484
        %v1486 = vperm.slane %v1481, %v1485
        %1488 = vset.pattern.permute.xlu0 1
        %1489 = vperm.xlu0 %1488, %v1375
        %v1490 = vpop.permute.xlu0 %1489
        %v1493 = vunpack.c.l.s4 839922192
        %v1494 = vunpack.c.0.s8 %v1493
        %v1495 = vperm.slane %v1490, %v1494
        %1497 = vset.pattern.permute.xlu0 1
        %1498 = vperm.xlu0 %1497, %v1376
        %v1499 = vpop.permute.xlu0 %1498
        %v1502 = vunpack.c.l.s4 839922192
        %v1503 = vunpack.c.0.s8 %v1502
        %v1504 = vperm.slane %v1499, %v1503
        %1506 = vset.pattern.permute.xlu0 1
        %1507 = vperm.xlu0 %1506, %v1377
        %v1508 = vpop.permute.xlu0 %1507
        %v1511 = vunpack.c.l.s4 839922192
        %v1512 = vunpack.c.0.s8 %v1511
        %v1513 = vperm.slane %v1508, %v1512
        %1515 = vset.pattern.permute.xlu0 1
        %1516 = vperm.xlu0 %1515, %v1378
        %v1517 = vpop.permute.xlu0 %1516
        %v1520 = vunpack.c.l.s4 839922192
        %v1521 = vunpack.c.0.s8 %v1520
        %v1522 = vperm.slane %v1517, %v1521
        %v1523 = vunpack.c.l.bf16 %v1387
        %v1524 = vunpack.c.l.bf16 %v1396
        %v1525 = vunpack.c.l.bf16 %v1405
        %v1526 = vunpack.c.l.bf16 %v1414
        %v1527 = vunpack.c.l.bf16 %v1423
        %v1528 = vunpack.c.l.bf16 %v1432
        %v1529 = vunpack.c.l.bf16 %v1441
        %v1530 = vunpack.c.l.bf16 %v1450
        %v1531 = vunpack.c.l.bf16 %v1459
        %v1532 = vunpack.c.l.bf16 %v1468
        %v1533 = vunpack.c.l.bf16 %v1477
        %v1534 = vunpack.c.l.bf16 %v1486
        %v1535 = vunpack.c.l.bf16 %v1495
        %v1536 = vunpack.c.l.bf16 %v1504
        %v1537 = vunpack.c.l.bf16 %v1513
        %v1538 = vunpack.c.l.bf16 %v1522
        %v1539 = vmul.f32 %v816, %v1523
        %v1540 = vmul.f32 %v817, %v1524
        %v1541 = vmul.f32 %v818, %v1525
        %v1542 = vmul.f32 %v819, %v1526
        %v1543 = vmul.f32 %v820, %v1527
        %v1544 = vmul.f32 %v821, %v1528
        %v1545 = vmul.f32 %v822, %v1529
        %v1546 = vmul.f32 %v823, %v1530
        %v1547 = vmul.f32 %v824, %v1531
        %v1548 = vmul.f32 %v825, %v1532
        %v1549 = vmul.f32 %v826, %v1533
        %v1550 = vmul.f32 %v827, %v1534
        %v1551 = vmul.f32 %v828, %v1535
        %v1552 = vmul.f32 %v829, %v1536
        %v1553 = vmul.f32 %v830, %v1537
        %v1554 = vmul.f32 %v831, %v1538
        %v1555 = vpack.c.bf16 %v1540, %v1539
        %v1556 = vpack.c.bf16 %v1542, %v1541
        %v1557 = vpack.c.bf16 %v1544, %v1543
        %v1558 = vpack.c.bf16 %v1546, %v1545
        %v1559 = vpack.c.bf16 %v1548, %v1547
        %v1560 = vpack.c.bf16 %v1550, %v1549
        %v1561 = vpack.c.bf16 %v1552, %v1551
        %v1562 = vpack.c.bf16 %v1554, %v1553
        %s1563 = scalar_lea.vmem %s307, 128 [#allocation5]
        %v1564 = vld [vmem:[%s1563] sm:$0xf]
        %v1565 = vld [vmem:[%s1563 + $0x4] sm:$0xf]
        %v1566 = vld [vmem:[%s1563 + $0x8] sm:$0xf]
        %v1567 = vld [vmem:[%s1563 + $0xc] sm:$0xf]
        %v1568 = vld [vmem:[%s1563 + $0x10] sm:$0xf]
        %v1569 = vld [vmem:[%s1563 + $0x14] sm:$0xf]
        %v1570 = vld [vmem:[%s1563 + $0x18] sm:$0xf]
        %v1571 = vld [vmem:[%s1563 + $0x1c] sm:$0xf]
        %v1572 = vld [vmem:[%s1563 + $0x20] sm:$0xf]
        %v1573 = vld [vmem:[%s1563 + $0x24] sm:$0xf]
        %v1574 = vld [vmem:[%s1563 + $0x28] sm:$0xf]
        %v1575 = vld [vmem:[%s1563 + $0x2c] sm:$0xf]
        %v1576 = vld [vmem:[%s1563 + $0x30] sm:$0xf]
        %v1577 = vld [vmem:[%s1563 + $0x34] sm:$0xf]
        %v1578 = vld [vmem:[%s1563 + $0x38] sm:$0xf]
        %v1579 = vld [vmem:[%s1563 + $0x3c] sm:$0xf]
        %v1596 = vunpack.c.l.b16 %v1564
        %v1597 = vunpack.c.l.b16 %v1565
        %v1598 = vunpack.c.l.b16 %v1566
        %v1599 = vunpack.c.l.b16 %v1567
        %v1600 = vunpack.c.l.b16 %v1568
        %v1601 = vunpack.c.l.b16 %v1569
        %v1602 = vunpack.c.l.b16 %v1570
        %v1603 = vunpack.c.l.b16 %v1571
        %v1604 = vunpack.c.l.b16 %v1572
        %v1605 = vunpack.c.l.b16 %v1573
        %v1606 = vunpack.c.l.b16 %v1574
        %v1607 = vunpack.c.l.b16 %v1575
        %v1608 = vunpack.c.l.b16 %v1576
        %v1609 = vunpack.c.l.b16 %v1577
        %v1610 = vunpack.c.l.b16 %v1578
        %v1611 = vunpack.c.l.b16 %v1579
        %v1612 = vpack.c.b16 %v1597, %v1596
        %v1613 = vpack.c.b16 %v1599, %v1598
        %v1614 = vpack.c.b16 %v1601, %v1600
        %v1615 = vpack.c.b16 %v1603, %v1602
        %v1616 = vpack.c.b16 %v1605, %v1604
        %v1617 = vpack.c.b16 %v1607, %v1606
        %v1618 = vpack.c.b16 %v1609, %v1608
        %v1619 = vpack.c.b16 %v1611, %v1610
        %1628 = vmatpush.bf16.msra.mxu0 %v1619
        %1629 = vmatpush.bf16.msra.mxu0 %v1618
        %1630 = vmatpush.bf16.msra.mxu0 %v1617
        %1631 = vmatpush.bf16.msra.mxu0 %v1616
        %1632 = vmatpush.bf16.msra.mxu0 %v1615
        %1633 = vmatpush.bf16.msra.mxu0 %v1614
        %1634 = vmatpush.bf16.msra.mxu0 %v1613
        %1635 = vmatpush.bf16.msra.mxu0 %v1612
        %1636 = vmatmul.bf16.gmra.mxu0 %v1555
        %v1637 = vpop.f32.mrf.mxu0
        %v1638 = vadd.f32 0.0, %v1637
        %v1639 = vpop.f32.mrf.mxu0
        %v1640 = vadd.f32 0.0, %v1639
        %1641 = vmatmul.bf16.gmra.mxu0 %v1556
        %v1642 = vpop.f32.mrf.mxu0
        %v1643 = vadd.f32 0.0, %v1642
        %v1644 = vpop.f32.mrf.mxu0
        %v1645 = vadd.f32 0.0, %v1644
        %1646 = vmatmul.bf16.gmra.mxu0 %v1557
        %v1647 = vpop.f32.mrf.mxu0
        %v1648 = vadd.f32 0.0, %v1647
        %v1649 = vpop.f32.mrf.mxu0
        %v1650 = vadd.f32 0.0, %v1649
        %1651 = vmatmul.bf16.gmra.mxu0 %v1558
        %v1652 = vpop.f32.mrf.mxu0
        %v1653 = vadd.f32 0.0, %v1652
        %v1654 = vpop.f32.mrf.mxu0
        %v1655 = vadd.f32 0.0, %v1654
        %1656 = vmatmul.bf16.gmra.mxu0 %v1559
        %v1657 = vpop.f32.mrf.mxu0
        %v1658 = vadd.f32 0.0, %v1657
        %v1659 = vpop.f32.mrf.mxu0
        %v1660 = vadd.f32 0.0, %v1659
        %1661 = vmatmul.bf16.gmra.mxu0 %v1560
        %v1662 = vpop.f32.mrf.mxu0
        %v1663 = vadd.f32 0.0, %v1662
        %v1664 = vpop.f32.mrf.mxu0
        %v1665 = vadd.f32 0.0, %v1664
        %1666 = vmatmul.bf16.gmra.mxu0 %v1561
        %v1667 = vpop.f32.mrf.mxu0
        %v1668 = vadd.f32 0.0, %v1667
        %v1669 = vpop.f32.mrf.mxu0
        %v1670 = vadd.f32 0.0, %v1669
        %1671 = vmatmul.bf16.gmra.mxu0 %v1562
        %v1672 = vpop.f32.mrf.mxu0
        %v1673 = vadd.f32 0.0, %v1672
        %v1674 = vpop.f32.mrf.mxu0
        %v1675 = vadd.f32 0.0, %v1674
        %1676 = vdwg.mxu0
        %v1677 = vadd.f32 %v1292, %v1638
        %v1678 = vadd.f32 %v1294, %v1640
        %v1679 = vadd.f32 %v1297, %v1643
        %v1680 = vadd.f32 %v1299, %v1645
        %v1681 = vadd.f32 %v1302, %v1648
        %v1682 = vadd.f32 %v1304, %v1650
        %v1683 = vadd.f32 %v1307, %v1653
        %v1684 = vadd.f32 %v1309, %v1655
        %v1685 = vadd.f32 %v1312, %v1658
        %v1686 = vadd.f32 %v1314, %v1660
        %v1687 = vadd.f32 %v1317, %v1663
        %v1688 = vadd.f32 %v1319, %v1665
        %v1689 = vadd.f32 %v1322, %v1668
        %v1690 = vadd.f32 %v1324, %v1670
        %v1691 = vadd.f32 %v1327, %v1673
        %v1692 = vadd.f32 %v1329, %v1675
        %vm1693 = vcmp.eq.s32.totalorder %v410, 3
        %vm1694 = vcmp.eq.s32.totalorder %v411, 3
        %vm1695 = vcmp.eq.s32.totalorder %v412, 3
        %vm1696 = vcmp.eq.s32.totalorder %v413, 3
        %vm1697 = vcmp.eq.s32.totalorder %v414, 3
        %vm1698 = vcmp.eq.s32.totalorder %v415, 3
        %vm1699 = vcmp.eq.s32.totalorder %v416, 3
        %vm1700 = vcmp.eq.s32.totalorder %v417, 3
        %vm1701 = vcmp.eq.s32.totalorder %v418, 3
        %vm1702 = vcmp.eq.s32.totalorder %v419, 3
        %vm1703 = vcmp.eq.s32.totalorder %v420, 3
        %vm1704 = vcmp.eq.s32.totalorder %v421, 3
        %vm1705 = vcmp.eq.s32.totalorder %v422, 3
        %vm1706 = vcmp.eq.s32.totalorder %v423, 3
        %vm1707 = vcmp.eq.s32.totalorder %v424, 3
        %vm1708 = vcmp.eq.s32.totalorder %v425, 3
        %v1709 = vsel %vm1693, 1.0, 0.0
        %v1710 = vsel %vm1694, 1.0, 0.0
        %v1711 = vsel %vm1695, 1.0, 0.0
        %v1712 = vsel %vm1696, 1.0, 0.0
        %v1713 = vsel %vm1697, 1.0, 0.0
        %v1714 = vsel %vm1698, 1.0, 0.0
        %v1715 = vsel %vm1699, 1.0, 0.0
        %v1716 = vsel %vm1700, 1.0, 0.0
        %v1717 = vsel %vm1701, 1.0, 0.0
        %v1718 = vsel %vm1702, 1.0, 0.0
        %v1719 = vsel %vm1703, 1.0, 0.0
        %v1720 = vsel %vm1704, 1.0, 0.0
        %v1721 = vsel %vm1705, 1.0, 0.0
        %v1722 = vsel %vm1706, 1.0, 0.0
        %v1723 = vsel %vm1707, 1.0, 0.0
        %v1724 = vsel %vm1708, 1.0, 0.0
        %v1725 = vpack.c.bf16 %v1709, %v1709
        %v1726 = vpack.c.bf16 %v1710, %v1710
        %v1727 = vpack.c.bf16 %v1711, %v1711
        %v1728 = vpack.c.bf16 %v1712, %v1712
        %v1729 = vpack.c.bf16 %v1713, %v1713
        %v1730 = vpack.c.bf16 %v1714, %v1714
        %v1731 = vpack.c.bf16 %v1715, %v1715
        %v1732 = vpack.c.bf16 %v1716, %v1716
        %v1733 = vpack.c.bf16 %v1717, %v1717
        %v1734 = vpack.c.bf16 %v1718, %v1718
        %v1735 = vpack.c.bf16 %v1719, %v1719
        %v1736 = vpack.c.bf16 %v1720, %v1720
        %v1737 = vpack.c.bf16 %v1721, %v1721
        %v1738 = vpack.c.bf16 %v1722, %v1722
        %v1739 = vpack.c.bf16 %v1723, %v1723
        %v1740 = vpack.c.bf16 %v1724, %v1724
        %1742 = vset.pattern.permute.xlu0 1
        %1743 = vperm.xlu0 %1742, %v1725
        %v1744 = vpop.permute.xlu0 %1743
        %v1747 = vunpack.c.l.s4 839922192
        %v1748 = vunpack.c.0.s8 %v1747
        %v1749 = vperm.slane %v1744, %v1748
        %1751 = vset.pattern.permute.xlu0 1
        %1752 = vperm.xlu0 %1751, %v1726
        %v1753 = vpop.permute.xlu0 %1752
        %v1756 = vunpack.c.l.s4 839922192
        %v1757 = vunpack.c.0.s8 %v1756
        %v1758 = vperm.slane %v1753, %v1757
        %1760 = vset.pattern.permute.xlu0 1
        %1761 = vperm.xlu0 %1760, %v1727
        %v1762 = vpop.permute.xlu0 %1761
        %v1765 = vunpack.c.l.s4 839922192
        %v1766 = vunpack.c.0.s8 %v1765
        %v1767 = vperm.slane %v1762, %v1766
        %1769 = vset.pattern.permute.xlu0 1
        %1770 = vperm.xlu0 %1769, %v1728
        %v1771 = vpop.permute.xlu0 %1770
        %v1774 = vunpack.c.l.s4 839922192
        %v1775 = vunpack.c.0.s8 %v1774
        %v1776 = vperm.slane %v1771, %v1775
        %1778 = vset.pattern.permute.xlu0 1
        %1779 = vperm.xlu0 %1778, %v1729
        %v1780 = vpop.permute.xlu0 %1779
        %v1783 = vunpack.c.l.s4 839922192
        %v1784 = vunpack.c.0.s8 %v1783
        %v1785 = vperm.slane %v1780, %v1784
        %1787 = vset.pattern.permute.xlu0 1
        %1788 = vperm.xlu0 %1787, %v1730
        %v1789 = vpop.permute.xlu0 %1788
        %v1792 = vunpack.c.l.s4 839922192
        %v1793 = vunpack.c.0.s8 %v1792
        %v1794 = vperm.slane %v1789, %v1793
        %1796 = vset.pattern.permute.xlu0 1
        %1797 = vperm.xlu0 %1796, %v1731
        %v1798 = vpop.permute.xlu0 %1797
        %v1801 = vunpack.c.l.s4 839922192
        %v1802 = vunpack.c.0.s8 %v1801
        %v1803 = vperm.slane %v1798, %v1802
        %1805 = vset.pattern.permute.xlu0 1
        %1806 = vperm.xlu0 %1805, %v1732
        %v1807 = vpop.permute.xlu0 %1806
        %v1810 = vunpack.c.l.s4 839922192
        %v1811 = vunpack.c.0.s8 %v1810
        %v1812 = vperm.slane %v1807, %v1811
        %1814 = vset.pattern.permute.xlu0 1
        %1815 = vperm.xlu0 %1814, %v1733
        %v1816 = vpop.permute.xlu0 %1815
        %v1819 = vunpack.c.l.s4 839922192
        %v1820 = vunpack.c.0.s8 %v1819
        %v1821 = vperm.slane %v1816, %v1820
        %1823 = vset.pattern.permute.xlu0 1
        %1824 = vperm.xlu0 %1823, %v1734
        %v1825 = vpop.permute.xlu0 %1824
        %v1828 = vunpack.c.l.s4 839922192
        %v1829 = vunpack.c.0.s8 %v1828
        %v1830 = vperm.slane %v1825, %v1829
        %1832 = vset.pattern.permute.xlu0 1
        %1833 = vperm.xlu0 %1832, %v1735
        %v1834 = vpop.permute.xlu0 %1833
        %v1837 = vunpack.c.l.s4 839922192
        %v1838 = vunpack.c.0.s8 %v1837
        %v1839 = vperm.slane %v1834, %v1838
        %1841 = vset.pattern.permute.xlu0 1
        %1842 = vperm.xlu0 %1841, %v1736
        %v1843 = vpop.permute.xlu0 %1842
        %v1846 = vunpack.c.l.s4 839922192
        %v1847 = vunpack.c.0.s8 %v1846
        %v1848 = vperm.slane %v1843, %v1847
        %1850 = vset.pattern.permute.xlu0 1
        %1851 = vperm.xlu0 %1850, %v1737
        %v1852 = vpop.permute.xlu0 %1851
        %v1855 = vunpack.c.l.s4 839922192
        %v1856 = vunpack.c.0.s8 %v1855
        %v1857 = vperm.slane %v1852, %v1856
        %1859 = vset.pattern.permute.xlu0 1
        %1860 = vperm.xlu0 %1859, %v1738
        %v1861 = vpop.permute.xlu0 %1860
        %v1864 = vunpack.c.l.s4 839922192
        %v1865 = vunpack.c.0.s8 %v1864
        %v1866 = vperm.slane %v1861, %v1865
        %1868 = vset.pattern.permute.xlu0 1
        %1869 = vperm.xlu0 %1868, %v1739
        %v1870 = vpop.permute.xlu0 %1869
        %v1873 = vunpack.c.l.s4 839922192
        %v1874 = vunpack.c.0.s8 %v1873
        %v1875 = vperm.slane %v1870, %v1874
        %1877 = vset.pattern.permute.xlu0 1
        %1878 = vperm.xlu0 %1877, %v1740
        %v1879 = vpop.permute.xlu0 %1878
        %v1882 = vunpack.c.l.s4 839922192
        %v1883 = vunpack.c.0.s8 %v1882
        %v1884 = vperm.slane %v1879, %v1883
        %v1885 = vunpack.c.l.bf16 %v1749
        %v1886 = vunpack.c.l.bf16 %v1758
        %v1887 = vunpack.c.l.bf16 %v1767
        %v1888 = vunpack.c.l.bf16 %v1776
        %v1889 = vunpack.c.l.bf16 %v1785
        %v1890 = vunpack.c.l.bf16 %v1794
        %v1891 = vunpack.c.l.bf16 %v1803
        %v1892 = vunpack.c.l.bf16 %v1812
        %v1893 = vunpack.c.l.bf16 %v1821
        %v1894 = vunpack.c.l.bf16 %v1830
        %v1895 = vunpack.c.l.bf16 %v1839
        %v1896 = vunpack.c.l.bf16 %v1848
        %v1897 = vunpack.c.l.bf16 %v1857
        %v1898 = vunpack.c.l.bf16 %v1866
        %v1899 = vunpack.c.l.bf16 %v1875
        %v1900 = vunpack.c.l.bf16 %v1884
        %v1901 = vmul.f32 %v816, %v1885
        %v1902 = vmul.f32 %v817, %v1886
        %v1903 = vmul.f32 %v818, %v1887
        %v1904 = vmul.f32 %v819, %v1888
        %v1905 = vmul.f32 %v820, %v1889
        %v1906 = vmul.f32 %v821, %v1890
        %v1907 = vmul.f32 %v822, %v1891
        %v1908 = vmul.f32 %v823, %v1892
        %v1909 = vmul.f32 %v824, %v1893
        %v1910 = vmul.f32 %v825, %v1894
        %v1911 = vmul.f32 %v826, %v1895
        %v1912 = vmul.f32 %v827, %v1896
        %v1913 = vmul.f32 %v828, %v1897
        %v1914 = vmul.f32 %v829, %v1898
        %v1915 = vmul.f32 %v830, %v1899
        %v1916 = vmul.f32 %v831, %v1900
        %v1917 = vpack.c.bf16 %v1902, %v1901
        %v1918 = vpack.c.bf16 %v1904, %v1903
        %v1919 = vpack.c.bf16 %v1906, %v1905
        %v1920 = vpack.c.bf16 %v1908, %v1907
        %v1921 = vpack.c.bf16 %v1910, %v1909
        %v1922 = vpack.c.bf16 %v1912, %v1911
        %v1923 = vpack.c.bf16 %v1914, %v1913
        %v1924 = vpack.c.bf16 %v1916, %v1915
        %s1925 = scalar_lea.vmem %s307, 192 [#allocation5]
        %v1926 = vld [vmem:[%s1925] sm:$0xf]
        %v1927 = vld [vmem:[%s1925 + $0x4] sm:$0xf]
        %v1928 = vld [vmem:[%s1925 + $0x8] sm:$0xf]
        %v1929 = vld [vmem:[%s1925 + $0xc] sm:$0xf]
        %v1930 = vld [vmem:[%s1925 + $0x10] sm:$0xf]
        %v1931 = vld [vmem:[%s1925 + $0x14] sm:$0xf]
        %v1932 = vld [vmem:[%s1925 + $0x18] sm:$0xf]
        %v1933 = vld [vmem:[%s1925 + $0x1c] sm:$0xf]
        %v1934 = vld [vmem:[%s1925 + $0x20] sm:$0xf]
        %v1935 = vld [vmem:[%s1925 + $0x24] sm:$0xf]
        %v1936 = vld [vmem:[%s1925 + $0x28] sm:$0xf]
        %v1937 = vld [vmem:[%s1925 + $0x2c] sm:$0xf]
        %v1938 = vld [vmem:[%s1925 + $0x30] sm:$0xf]
        %v1939 = vld [vmem:[%s1925 + $0x34] sm:$0xf]
        %v1940 = vld [vmem:[%s1925 + $0x38] sm:$0xf]
        %v1941 = vld [vmem:[%s1925 + $0x3c] sm:$0xf]
        %v1958 = vunpack.c.l.b16 %v1926
        %v1959 = vunpack.c.l.b16 %v1927
        %v1960 = vunpack.c.l.b16 %v1928
        %v1961 = vunpack.c.l.b16 %v1929
        %v1962 = vunpack.c.l.b16 %v1930
        %v1963 = vunpack.c.l.b16 %v1931
        %v1964 = vunpack.c.l.b16 %v1932
        %v1965 = vunpack.c.l.b16 %v1933
        %v1966 = vunpack.c.l.b16 %v1934
        %v1967 = vunpack.c.l.b16 %v1935
        %v1968 = vunpack.c.l.b16 %v1936
        %v1969 = vunpack.c.l.b16 %v1937
        %v1970 = vunpack.c.l.b16 %v1938
        %v1971 = vunpack.c.l.b16 %v1939
        %v1972 = vunpack.c.l.b16 %v1940
        %v1973 = vunpack.c.l.b16 %v1941
        %v1974 = vpack.c.b16 %v1959, %v1958
        %v1975 = vpack.c.b16 %v1961, %v1960
        %v1976 = vpack.c.b16 %v1963, %v1962
        %v1977 = vpack.c.b16 %v1965, %v1964
        %v1978 = vpack.c.b16 %v1967, %v1966
        %v1979 = vpack.c.b16 %v1969, %v1968
        %v1980 = vpack.c.b16 %v1971, %v1970
        %v1981 = vpack.c.b16 %v1973, %v1972
        %1990 = vmatpush.bf16.msra.mxu0 %v1981
        %1991 = vmatpush.bf16.msra.mxu0 %v1980
        %1992 = vmatpush.bf16.msra.mxu0 %v1979
        %1993 = vmatpush.bf16.msra.mxu0 %v1978
        %1994 = vmatpush.bf16.msra.mxu0 %v1977
        %1995 = vmatpush.bf16.msra.mxu0 %v1976
        %1996 = vmatpush.bf16.msra.mxu0 %v1975
        %1997 = vmatpush.bf16.msra.mxu0 %v1974
        %1998 = vmatmul.bf16.gmra.mxu0 %v1917
        %v1999 = vpop.f32.mrf.mxu0
        %v2000 = vadd.f32 0.0, %v1999
        %v2001 = vpop.f32.mrf.mxu0
        %v2002 = vadd.f32 0.0, %v2001
        %2003 = vmatmul.bf16.gmra.mxu0 %v1918
        %v2004 = vpop.f32.mrf.mxu0
        %v2005 = vadd.f32 0.0, %v2004
        %v2006 = vpop.f32.mrf.mxu0
        %v2007 = vadd.f32 0.0, %v2006
        %2008 = vmatmul.bf16.gmra.mxu0 %v1919
        %v2009 = vpop.f32.mrf.mxu0
        %v2010 = vadd.f32 0.0, %v2009
        %v2011 = vpop.f32.mrf.mxu0
        %v2012 = vadd.f32 0.0, %v2011
        %2013 = vmatmul.bf16.gmra.mxu0 %v1920
        %v2014 = vpop.f32.mrf.mxu0
        %v2015 = vadd.f32 0.0, %v2014
        %v2016 = vpop.f32.mrf.mxu0
        %v2017 = vadd.f32 0.0, %v2016
        %2018 = vmatmul.bf16.gmra.mxu0 %v1921
        %v2019 = vpop.f32.mrf.mxu0
        %v2020 = vadd.f32 0.0, %v2019
        %v2021 = vpop.f32.mrf.mxu0
        %v2022 = vadd.f32 0.0, %v2021
        %2023 = vmatmul.bf16.gmra.mxu0 %v1922
        %v2024 = vpop.f32.mrf.mxu0
        %v2025 = vadd.f32 0.0, %v2024
        %v2026 = vpop.f32.mrf.mxu0
        %v2027 = vadd.f32 0.0, %v2026
        %2028 = vmatmul.bf16.gmra.mxu0 %v1923
        %v2029 = vpop.f32.mrf.mxu0
        %v2030 = vadd.f32 0.0, %v2029
        %v2031 = vpop.f32.mrf.mxu0
        %v2032 = vadd.f32 0.0, %v2031
        %2033 = vmatmul.bf16.gmra.mxu0 %v1924
        %v2034 = vpop.f32.mrf.mxu0
        %v2035 = vadd.f32 0.0, %v2034
        %v2036 = vpop.f32.mrf.mxu0
        %v2037 = vadd.f32 0.0, %v2036
        %2038 = vdwg.mxu0
        %v2039 = vadd.f32 %v1677, %v2000
        %v2040 = vadd.f32 %v1678, %v2002
        %v2041 = vadd.f32 %v1679, %v2005
        %v2042 = vadd.f32 %v1680, %v2007
        %v2043 = vadd.f32 %v1681, %v2010
        %v2044 = vadd.f32 %v1682, %v2012
        %v2045 = vadd.f32 %v1683, %v2015
        %v2046 = vadd.f32 %v1684, %v2017
        %v2047 = vadd.f32 %v1685, %v2020
        %v2048 = vadd.f32 %v1686, %v2022
        %v2049 = vadd.f32 %v1687, %v2025
        %v2050 = vadd.f32 %v1688, %v2027
        %v2051 = vadd.f32 %v1689, %v2030
        %v2052 = vadd.f32 %v1690, %v2032
        %v2053 = vadd.f32 %v1691, %v2035
        %v2054 = vadd.f32 %v1692, %v2037
        %v2055 = vpack.c.bf16 %v2040, %v2039
        %v2056 = vpack.c.bf16 %v2042, %v2041
        %v2057 = vpack.c.bf16 %v2044, %v2043
        %v2058 = vpack.c.bf16 %v2046, %v2045
        %v2059 = vpack.c.bf16 %v2048, %v2047
        %v2060 = vpack.c.bf16 %v2050, %v2049
        %v2061 = vpack.c.bf16 %v2052, %v2051
        %v2062 = vpack.c.bf16 %v2054, %v2053
        %v2063 = vlaneseq
        %v2064 = vshrl.u32 %v2063, 7
        %v2065 = vadd.s32 %v2064, 8
        %v2066 = vadd.s32 %v2064, 16
        %v2067 = vperm.slane %v426, 0
        %vm2068 = vcmp.eq.s32.totalorder %v2064, %v2067
        %vm2069 = vcmp.eq.s32.totalorder %v2065, %v2067
        %vm2070 = vcmp.eq.s32.totalorder %v2066, %v2067
        %v2072 = vperm.slane %v427, 0
        %v2074 = vsel %vm2068, %v2072, 0.0
        %v2075 = vsel %vm2069, %v2072, 0.0
        %v2076 = vsel %vm2070, %v2072, 0.0
        %v2077 = vpack.c.bf16 %v2075, %v2074
        %v2078 = vpack.c.bf16 %v2076, %v2076
        %v2079 = vld [vmem:[#allocation2] sm:$0xff]
        %v2080 = vld [vmem:[#allocation2 + $0x8] sm:$0xff]
        %v2081 = vld [vmem:[#allocation2 + $0x10] sm:$0xff]
        %2082 = vmatpush.bf16.msra.mxu0 %v2062
        %2083 = vmatpush.bf16.msra.mxu0 %v2061
        %2084 = vmatpush.bf16.msra.mxu0 %v2060
        %2085 = vmatpush.bf16.msra.mxu0 %v2059
        %2086 = vmatpush.bf16.msra.mxu0 %v2058
        %2087 = vmatpush.bf16.msra.mxu0 %v2057
        %2088 = vmatpush.bf16.msra.mxu0 %v2056
        %2089 = vmatpush.bf16.msra.mxu0 %v2055
        %2090 = vmatmul.bf16.gmra.mxu0 %v2077
        %v2091 = vpop.f32.mrf.mxu0
        %v2092 = vadd.f32 0.0, %v2091
        %v2093 = vpop.f32.mrf.mxu0
        %v2094 = vadd.f32 0.0, %v2093
        %2095 = vmatmul.bf16.gmra.mxu0 %v2078
        %v2096 = vpop.f32.mrf.mxu0
        %v2097 = vadd.f32 0.0, %v2096
        %v2098 = vpop.f32.mrf.mxu0
        %2099 = vdwg.mxu0
        %v2100 = vadd.f32 %v2079, %v2092
        %v2101 = vadd.f32 %v2080, %v2094
        %v2102 = vadd.f32 %v2081, %v2097
        %2103 = vst [vmem:[#allocation2] sm:$0xff] %v2100
        %2104 = vst [vmem:[#allocation2 + $0x8] sm:$0xff] %v2101
        %2105 = vst [vmem:[#allocation2 + $0x10] sm:$0xff] %v2102
        %p2106 = scmp.eq.s32.totalorder %s30, 2
        // Predicated region
        $region76: #{tpu_custom_call.1} parent=43 // pred_check
          %p2107 = pneg %p2106
        $region77: #{tpu_custom_call.1} parent=43 // pred_check_branch
          %2109 = sbr.rel (%p2107) target = $region79
        $region78: #{tpu_custom_call.1} parent=43 // pred_region
          %v2110 = vld [vmem:[#allocation2] sm:$0xff]
          %v2111 = vld [vmem:[#allocation2 + $0x8] sm:$0xff]
          %v2112 = vld [vmem:[#allocation2 + $0x10] sm:$0xff]
          %v2113 = vld [vmem:[%s362] sm:$0x1]
          %v2115 = vperm.slane %v2113, 0
          %v2117 = vadd.f32 %v2110, %v2115
          %v2118 = vadd.f32 %v2111, %v2115
          %v2119 = vadd.f32 %v2112, %v2115
          %v2120 = vmax.f32 %v2117, 0.0
          %v2121 = vmax.f32 %v2118, 0.0
          %v2122 = vmax.f32 %v2119, 0.0
          %2123 = vst [vmem:[#allocation8] sm:$0xff] %v2120
          %2124 = vst [vmem:[#allocation8 + $0x8] sm:$0xff] %v2121
          %2125 = vst [vmem:[#allocation8 + $0x10] sm:$0xff] %v2122
        $region79: #{tpu_custom_call.1} parent=43 // pred_fallthru
          _
        %p2126 = scmp.eq.s32.totalorder %s29, 1
        %p2127 = pnand %p2126, %p2106
        %p2128 = pneg %p2127
        // Predicated region
        $region80: #{tpu_custom_call.1} parent=43 // pred_check
          _
        $region81: #{tpu_custom_call.1} parent=43 // pred_check_branch
          %2130 = sbr.rel (%p2127) target = $region83
        $region82: #{tpu_custom_call.1} parent=43 // pred_region
          %v2131 = vld [vmem:[%s4] sm:$0x1]
          %v2132 = vperm.slane %v2131, 0
          %vm2133 = vcmp.eq.s32.totalorder %v2064, %v2132
          %v2134 = vsel %vm2133, 1.0, 0.0
          %v2135 = vpack.c.bf16 %v2134, %v2134
          %v2136 = vld [vmem:[#allocation8] sm:$0xff]
          %v2137 = vld [vmem:[#allocation8 + $0x8] sm:$0xff]
          %v2138 = vld [vmem:[#allocation8 + $0x10] sm:$0xff]
          %v2139 = vpack.c.bf16 %v2137, %v2136
          %v2140 = vpack.c.bf16 %v2138, %v2138
          %v2142 = vsel %vm530, %v2135, 0
          %v2145 = vsel %vm555, %v2140, 0
          %2147 = vmatpush.bf16.msra.mxu0 0
          %2148 = vmatpush.bf16.msra.mxu0 0
          %2149 = vmatpush.bf16.msra.mxu0 0
          %2150 = vmatpush.bf16.msra.mxu0 0
          %2151 = vmatpush.bf16.msra.mxu0 0
          %2152 = vmatpush.bf16.msra.mxu0 0
          %2153 = vmatpush.bf16.msra.mxu0 %v2145
          %2154 = vmatpush.bf16.msra.mxu0 %v2139
          %2155 = vmatmul.bf16.gmra.mxu0 %v2142
          %v2156 = vpop.f32.mrf.mxu0
          %v2157 = vadd.f32 0.0, %v2156
          %v2158 = vpop.f32.mrf.mxu0
          %2159 = vdwg.mxu0
          %2160 = vst [vmem:[#allocation9] sm:$0xff] %v2157
        $region83: #{tpu_custom_call.1} parent=43 // pred_fallthru
          _
        // Predicated region
        $region84: #{tpu_custom_call.1} parent=43 // pred_check
          %p2161 = pneg %p201
        $region85: #{tpu_custom_call.1} parent=43 // pred_check_branch
          %2163 = sbr.rel (%p2161) target = $region87
        $region86: #{tpu_custom_call.1} parent=43 // pred_region
          %2165 = vsyncadd [#allocation7], 0
          %s2166 = sshll.u32 [#allocation8], 4
          %s2167 = int_to_ptr.vmem [resolvable:$true] %s2166
          %s2168 = sshll.u32 %s7, 4
          %s2169 = int_to_ptr.hbm [resolvable:$true] %s2168
          %2174 = dma.vmem_to_hbm [thread:$0]  %s2167, 384, %s2169, [#allocation7], 128, 128, 8
        $region87: #{tpu_custom_call.1} parent=43 // pred_fallthru
          _
        // Predicated region
        $region88: #{tpu_custom_call.1} parent=43 // pred_check
          %p2175 = pneg %p222
        $region89: #{tpu_custom_call.1} parent=43 // pred_check_branch
          %2177 = sbr.rel (%p2175) target = $region91
        $region90: #{tpu_custom_call.1} parent=43 // pred_region
          %2179 = vsyncadd [#allocation10], 0
          %s2181 = sshll.u32 [#allocation9], 4
          %s2182 = int_to_ptr.vmem [resolvable:$true] %s2181
          %s2183 = sshll.u32 %s8, 4
          %s2184 = int_to_ptr.hbm [resolvable:$true] %s2183
          %2186 = dma.vmem_to_hbm [thread:$0]  %s2182, 128, %s2184, [#allocation10]
        $region91: #{tpu_custom_call.1} parent=43 // pred_fallthru
          _
        // Predicated region
        $region92: #{tpu_custom_call.1} parent=43 // pred_check
          %p2187 = pneg %p201
        $region93: #{tpu_custom_call.1} parent=43 // pred_check_branch
          %2189 = sbr.rel (%p2187) target = $region95
        $region94: #{tpu_custom_call.1} parent=43 // pred_region
          %2191 = dma.done [#allocation7], 384
        $region95: #{tpu_custom_call.1} parent=43 // pred_fallthru
          _
        // Predicated region
        $region96: #{tpu_custom_call.1} parent=43 // pred_check
          %p2192 = pneg %p222
        $region97: #{tpu_custom_call.1} parent=43 // pred_check_branch
          %2194 = sbr.rel (%p2192) target = $region99
        $region98: #{tpu_custom_call.1} parent=43 // pred_region
          %2196 = dma.done [#allocation10], 128
        $region99: #{tpu_custom_call.1} parent=43 // pred_fallthru
          _
      $region44: #{tpu_custom_call.1} parent=5 // pred_fallthru
        _
      %p2197 = scmp.le.s32.totalorder 2, %s20
      // Predicated region
      $region100: #{tpu_custom_call.1} parent=5 // pred_check
        %p2198 = pneg %p2197
      $region101: #{tpu_custom_call.1} parent=5 // pred_check_branch
        %2200 = sbr.rel (%p2198) target = $region103
      $region102: #{tpu_custom_call.1} parent=5 // pred_region
        %s2201 = ssub.s32 %s20, 2
      $region103: #{tpu_custom_call.1} parent=5 // pred_fallthru
        _
    $region6: #{tpu_custom_call.1} parent=1 // loop_footer
      %s24 = sadd.s32 1, %s20
    $region7: #{tpu_custom_call.1} parent=1 // loop_footer_branch
      %19 = sbr.rel target = $region3
    $region8: #{tpu_custom_call.1} parent=1 // loop_exit
      _
    %2202 = vsyncpa [#allocation6], 1
    %s2203 = scalar_lea.sflag [#allocation6], 1
    %2204 = vsyncpa %s2203, 1
    %2205 = vsyncpa [#allocation7], 1
    %s2206 = scalar_lea.sflag [#allocation7], 1
    %2207 = vsyncpa %s2206, 1
    %2208 = vsyncpa [#allocation10], 1
  %2209 = vsyncmov [#allocation4]
  %s2210 = vpop.sfrf %2209
  %p2211 = scmp.eq.s32.totalorder %s2210, 0
  %p2212 = pneg %p2211
  %2214 = shalt.err (%p2212)

</llo_original>
